<compile_context>
chip_gen: v7x
topology: tpu7x:2x2x1
jax: 0.10.0
libtpu: 0.0.40
codegen_flags: <defaults>
</compile_context>

<pallas_src>
import functools

import jax
import jax.numpy as jnp
from jax.experimental import pallas as pl
from jax.experimental.pallas import tpu as pltpu


# ----------------------------- Pallas kernels ------------------------------

def _layernorm_kernel(x_ref, g_ref, b_ref, o_ref, *, eps):
    x = x_ref[...].astype(jnp.float32)                     # (N, D)
    mean = jnp.mean(x, axis=-1, keepdims=True)
    xc = x - mean
    var = jnp.mean(xc * xc, axis=-1, keepdims=True)
    inv = jax.lax.rsqrt(var + eps)
    y = xc * inv * g_ref[...].astype(jnp.float32) + b_ref[...].astype(jnp.float32)
    o_ref[...] = y.astype(o_ref.dtype)


def _linear_kernel(x_ref, w_ref, b_ref, o_ref, *, activation):
    x = x_ref[...].astype(jnp.float32)                     # (N, K)
    w = w_ref[...].astype(jnp.float32)                     # (K, M)
    y = jnp.dot(x, w, preferred_element_type=jnp.float32) + b_ref[...].astype(jnp.float32)
    if activation == "gelu":
        # TODO(synk): torch nn.GELU() is the exact erf form; the tanh approximation is
        # used here (Mosaic-safe on all TPU generations, max abs diff ~1e-3).
        y = jax.nn.gelu(y, approximate=True)
    o_ref[...] = y.astype(o_ref.dtype)


def _linear_residual_kernel(x_ref, w_ref, b_ref, r_ref, o_ref):
    x = x_ref[...].astype(jnp.float32)
    w = w_ref[...].astype(jnp.float32)
    y = jnp.dot(x, w, preferred_element_type=jnp.float32) + b_ref[...].astype(jnp.float32)
    o_ref[...] = (r_ref[...].astype(jnp.float32) + y).astype(o_ref.dtype)


def _mha_core_kernel(q_ref, k_ref, v_ref, o_ref, *, scale):
    q = q_ref[...].astype(jnp.float32)                     # (1, S, hd)
    k = k_ref[...].astype(jnp.float32)
    v = v_ref[...].astype(jnp.float32)
    s = jnp.einsum("bqd,bkd->bqk", q, k, preferred_element_type=jnp.float32) * scale
    m = jnp.max(s, axis=-1, keepdims=True)
    p = jnp.exp(s - m)
    p = p / jnp.sum(p, axis=-1, keepdims=True)
    o = jnp.einsum("bqk,bkd->bqd", p, v, preferred_element_type=jnp.float32)
    o_ref[...] = o.astype(o_ref.dtype)


# ------------------------------- wrappers -----------------------------------

def layer_norm(x, gamma, beta, eps=1e-5):
    shp = x.shape
    D = shp[-1]
    x2 = x.reshape(-1, D)
    out = pl.pallas_call(
        functools.partial(_layernorm_kernel, eps=eps),
        out_shape=jax.ShapeDtypeStruct(x2.shape, x.dtype),
    )(x2, gamma.reshape(1, D), beta.reshape(1, D))
    return out.reshape(shp)


def linear(x, w, b=None, activation=None):
    """x: (N, K); w: (K, M)  [already (in, out) layout]; b: (M,) or None."""
    N, K = x.shape
    M = w.shape[1]
    if b is None:
        b = jnp.zeros((M,), dtype=jnp.float32)
    return pl.pallas_call(
        functools.partial(_linear_kernel, activation=activation),
        out_shape=jax.ShapeDtypeStruct((N, M), x.dtype),
    )(x, w, b.reshape(1, M))


def linear_residual(x, w, b, residual):
    """residual + x @ w + b, fused in one kernel. x: (N, K); w: (K, M); residual: (N, M)."""
    N, K = x.shape
    M = w.shape[1]
    return pl.pallas_call(
        _linear_residual_kernel,
        out_shape=jax.ShapeDtypeStruct((N, M), x.dtype),
    )(x, w, b.reshape(1, M), residual)


def attention_core(q, k, v, scale):
    """q, k, v: (B*heads, S, hd) -> softmax(q k^T * scale) v, one grid step per head."""
    BH, S, hd = q.shape
    spec = pl.BlockSpec((1, S, hd), lambda h: (h, 0, 0))
    return pl.pallas_call(
        functools.partial(_mha_core_kernel, scale=scale),
        out_shape=jax.ShapeDtypeStruct((BH, S, hd), q.dtype),
        grid_spec=pltpu.PrefetchScalarGridSpec(
            num_scalar_prefetch=0,
            grid=(BH,),
            in_specs=[spec, spec, spec],
            out_specs=spec,
        ),
        compiler_params=pltpu.CompilerParams(
            dimension_semantics=("parallel",),
        ),
    )(q, k, v)


# ----------------------------- model forward --------------------------------

def multi_head_attention(x_ln, residual, in_proj_w, in_proj_b, out_proj_w, out_proj_b, n_head):
    """torch nn.MultiheadAttention(q=k=v=x_ln), output fused with `residual +`."""
    B, S, D = x_ln.shape
    hd = D // n_head
    qkv = linear(x_ln.reshape(B * S, D), in_proj_w.T, in_proj_b)          # (B*S, 3D)
    qkv = qkv.reshape(B, S, 3, n_head, hd)
    q = qkv[:, :, 0].transpose(0, 2, 1, 3).reshape(B * n_head, S, hd)
    k = qkv[:, :, 1].transpose(0, 2, 1, 3).reshape(B * n_head, S, hd)
    v = qkv[:, :, 2].transpose(0, 2, 1, 3).reshape(B * n_head, S, hd)
    o = attention_core(q, k, v, 1.0 / (hd ** 0.5))                        # (B*nh, S, hd)
    o = o.reshape(B, n_head, S, hd).transpose(0, 2, 1, 3).reshape(B * S, D)
    out = linear_residual(o, out_proj_w.T, out_proj_b, residual.reshape(B * S, D))
    return out.reshape(B, S, D)


def residual_attention_block(x, lp, n_head):
    B, S, D = x.shape
    # x = x + attn(ln_1(x))        (ln_attn is Identity: scale_attn=False)
    x = multi_head_attention(
        layer_norm(x, lp["ln_1_g"], lp["ln_1_b"]), x,
        lp["attn_in_w"], lp["attn_in_b"], lp["attn_out_w"], lp["attn_out_b"], n_head)
    # x = x + mlp(ln_2(x))         (mlp.ln is Identity: scale_fc=False)
    h = layer_norm(x, lp["ln_2_g"], lp["ln_2_b"]).reshape(B * S, D)
    h = linear(h, lp["mlp_fc_w"].T, lp["mlp_fc_b"], activation="gelu")
    x = linear_residual(h, lp["mlp_proj_w"].T, lp["mlp_proj_b"], x.reshape(B * S, D))
    return x.reshape(B, S, D)


@functools.partial(jax.jit, static_argnames=("patch_size", "n_head"))
def visual_transformer_forward(x, params, *, patch_size, n_head):
    B, C, H, W = x.shape
    p = patch_size
    gh, gw = H // p, W // p
    D = params["conv1_w"].shape[0]

    # conv1 (kernel=stride=patch, no bias) as im2col + matmul
    patches = (x.reshape(B, C, gh, p, gw, p)
                .transpose(0, 2, 4, 1, 3, 5)
                .reshape(B * gh * gw, C * p * p))
    w_patch = params["conv1_w"].reshape(D, C * p * p).T                   # (C*p*p, D)
    tokens = linear(patches, w_patch).reshape(B, gh * gw, D)

    cls = jnp.broadcast_to(params["class_embedding"].reshape(1, 1, D), (B, 1, D)).astype(tokens.dtype)
    x_seq = jnp.concatenate([cls, tokens], axis=1)                        # (B, S, D)
    x_seq = x_seq + params["positional_embedding"][None, :, :]

    x_seq = layer_norm(x_seq, params["ln_pre_g"], params["ln_pre_b"])

    for lp in params["layers"]:
        x_seq = residual_attention_block(x_seq, lp, n_head)

    x_cls = layer_norm(x_seq[:, 0, :], params["ln_post_g"], params["ln_post_b"])
    return linear(x_cls, params["proj"])                                  # (B, output_dim)


# ------------------------------ params / ref ---------------------------------

def init_params(key, *, width, layers, heads, mlp_ratio, patch_size, output_dim, n_tokens):
    D = width
    mlp_width = int(D * mlp_ratio)
    scale = D ** -0.5
    keys = jax.random.split(key, 8 + layers)

    def rnd(k, shape, s=0.02):
        return (s * jax.random.normal(k, shape, jnp.float32))

    params = {
        "conv1_w": rnd(keys[0], (D, 3, patch_size, patch_size)),
        "class_embedding": scale * jax.random.normal(keys[1], (D,), jnp.float32),
        "positional_embedding": scale * jax.random.normal(keys[2], (n_tokens, D), jnp.float32),
        "ln_pre_g": 1.0 + rnd(keys[3], (D,), 0.1), "ln_pre_b": rnd(keys[4], (D,), 0.1),
        "ln_post_g": 1.0 + rnd(keys[5], (D,), 0.1), "ln_post_b": rnd(keys[6], (D,), 0.1),
        "proj": scale * jax.random.normal(keys[7], (D, output_dim), jnp.float32),
        "layers": [],
    }
    for i in range(layers):
        lk = jax.random.split(keys[8 + i] if layers > 0 else keys[0], 12)
        params["layers"].append({
            "ln_1_g": 1.0 + rnd(lk[0], (D,), 0.1), "ln_1_b": rnd(lk[1], (D,), 0.1),
            "attn_in_w": rnd(lk[2], (3 * D, D)), "attn_in_b": rnd(lk[3], (3 * D,), 0.01),
            "attn_out_w": rnd(lk[4], (D, D)), "attn_out_b": rnd(lk[5], (D,), 0.01),
            "ln_2_g": 1.0 + rnd(lk[6], (D,), 0.1), "ln_2_b": rnd(lk[7], (D,), 0.1),
            "mlp_fc_w": rnd(lk[8], (mlp_width, D)), "mlp_fc_b": rnd(lk[9], (mlp_width,), 0.01),
            "mlp_proj_w": rnd(lk[10], (D, mlp_width)), "mlp_proj_b": rnd(lk[11], (D,), 0.01),
        })
    return params


def reference_forward(x, params, *, patch_size, n_head):
    """Pure-JAX reference of the same forward (same GELU approximation)."""
    eps = 1e-5

    def ln(v, g, b):
        mu = jnp.mean(v, axis=-1, keepdims=True)
        var = jnp.mean((v - mu) ** 2, axis=-1, keepdims=True)
        return (v - mu) / jnp.sqrt(var + eps) * g + b

    B, C, H, W = x.shape
    p = patch_size
    gh, gw = H // p, W // p
    D = params["conv1_w"].shape[0]
    patches = (x.reshape(B, C, gh, p, gw, p)
                .transpose(0, 2, 4, 1, 3, 5)
                .reshape(B * gh * gw, C * p * p))
    tokens = (patches @ params["conv1_w"].reshape(D, C * p * p).T).reshape(B, gh * gw, D)
    cls = jnp.broadcast_to(params["class_embedding"].reshape(1, 1, D), (B, 1, D))
    xs = jnp.concatenate([cls, tokens], axis=1) + params["positional_embedding"][None]
    xs = ln(xs, params["ln_pre_g"], params["ln_pre_b"])
    S = xs.shape[1]
    hd = D // n_head
    for lp in params["layers"]:
        h = ln(xs, lp["ln_1_g"], lp["ln_1_b"])
        qkv = (h.reshape(B * S, D) @ lp["attn_in_w"].T + lp["attn_in_b"]).reshape(B, S, 3, n_head, hd)
        q = qkv[:, :, 0].transpose(0, 2, 1, 3)
        k = qkv[:, :, 1].transpose(0, 2, 1, 3)
        v = qkv[:, :, 2].transpose(0, 2, 1, 3)
        s = jnp.einsum("bhqd,bhkd->bhqk", q, k) / (hd ** 0.5)
        a = jax.nn.softmax(s, axis=-1)
        o = jnp.einsum("bhqk,bhkd->bhqd", a, v).transpose(0, 2, 1, 3).reshape(B * S, D)
        o = o @ lp["attn_out_w"].T + lp["attn_out_b"]
        xs = xs + o.reshape(B, S, D)
        h = ln(xs, lp["ln_2_g"], lp["ln_2_b"]).reshape(B * S, D)
        h = jax.nn.gelu(h @ lp["mlp_fc_w"].T + lp["mlp_fc_b"], approximate=True)
        h = h @ lp["mlp_proj_w"].T + lp["mlp_proj_b"]
        xs = xs + h.reshape(B, S, D)
    xc = ln(xs[:, 0, :], params["ln_post_g"], params["ln_post_b"])
    return xc @ params["proj"]


# --------------------------------- main --------------------------------------

if __name__ == "__main__":
    key = jax.random.PRNGKey(0)
    kx, kp = jax.random.split(key)

    # Small shapes consistent with the module: 16x16 image, 4x4 patches -> 17 tokens.
    image_size, patch_size = 16, 4
    width, layers, heads, mlp_ratio, output_dim = 32, 2, 2, 4.0, 32
    B = 2
    grid = image_size // patch_size

    x = jax.random.normal(kx, (B, 3, image_size, image_size), dtype=jnp.float32)
    params = init_params(kp, width=width, layers=layers, heads=heads, mlp_ratio=mlp_ratio,
                         patch_size=patch_size, output_dim=output_dim,
                         n_tokens=grid * grid + 1)

    out = visual_transformer_forward(x, params, patch_size=patch_size, n_head=heads)
    out = jax.block_until_ready(out)
    assert out.shape == (B, output_dim)
    assert bool(jnp.all(jnp.isfinite(out)))

    with jax.default_matmul_precision("float32"):
        ref = reference_forward(x, params, patch_size=patch_size, n_head=heads)
    ref = jax.block_until_ready(ref)

    max_err = float(jnp.max(jnp.abs(out - ref)))
    assert jnp.allclose(out, ref, atol=1e-2, rtol=1e-2), f"max abs err = {max_err}"

    print("KERNEL_OK")
</pallas_src>

<mosaic_0001>
module attributes {stable_mosaic.version = 11 : i64} {
  func.func @_linear_kernel(%arg0: memref<32x48xf32, #tpu.memory_space<vmem>>, %arg1: memref<48x32xf32, #tpu.memory_space<vmem>>, %arg2: memref<1x32xf32, #tpu.memory_space<vmem>>, %arg3: memref<32x32xf32, #tpu.memory_space<vmem>>) attributes {dimension_semantics = [], scalar_prefetch = 0 : i64, scratch_operands = 0 : i64, tpu.core_type = #tpu.core_type<tc>} {
    %c0 = arith.constant 0 : index
    %c0_0 = arith.constant 0 : index
    %0 = vector.load %arg0[%c0, %c0_0] : memref<32x48xf32, #tpu.memory_space<vmem>>, vector<32x48xf32>
    %c0_1 = arith.constant 0 : index
    %c0_2 = arith.constant 0 : index
    %1 = vector.load %arg1[%c0_1, %c0_2] : memref<48x32xf32, #tpu.memory_space<vmem>>, vector<48x32xf32>
    %cst = arith.constant dense<0.000000e+00> : vector<32x32xf32>
    %2 = tpu.matmul %0, %1, %cst {dimension_numbers = #tpu.dot_dimension_numbers<[1], [0], [0], [1], [0, 0, 1, 1], [], []>} : vector<32x48xf32>, vector<48x32xf32>, vector<32x32xf32> -> vector<32x32xf32>
    %c0_3 = arith.constant 0 : index
    %c0_4 = arith.constant 0 : index
    %3 = vector.load %arg2[%c0_3, %c0_4] : memref<1x32xf32, #tpu.memory_space<vmem>>, vector<1x32xf32>
    %4 = vector.broadcast %3 : vector<1x32xf32> to vector<32x32xf32>
    %5 = arith.addf %2, %4 : vector<32x32xf32>
    %c0_5 = arith.constant 0 : index
    %c0_6 = arith.constant 0 : index
    %6 = vector.load %arg3[%c0_5, %c0_6] : memref<32x32xf32, #tpu.memory_space<vmem>>, vector<32x32xf32>
    tpu.vector_store %arg3[%c0_5, %c0_6], %5 {strides = array<i32>} : memref<32x32xf32, #tpu.memory_space<vmem>>, vector<32x32xf32>,
    return
  }
}

module attributes {stable_mosaic.version = 11 : i64} {
  func.func @_layernorm_kernel(%arg0: memref<34x32xf32, #tpu.memory_space<vmem>>, %arg1: memref<1x32xf32, #tpu.memory_space<vmem>>, %arg2: memref<1x32xf32, #tpu.memory_space<vmem>>, %arg3: memref<34x32xf32, #tpu.memory_space<vmem>>) attributes {dimension_semantics = [], scalar_prefetch = 0 : i64, scratch_operands = 0 : i64, tpu.core_type = #tpu.core_type<tc>} {
    %c0 = arith.constant 0 : index
    %c0_0 = arith.constant 0 : index
    %0 = vector.load %arg0[%c0, %c0_0] : memref<34x32xf32, #tpu.memory_space<vmem>>, vector<34x32xf32>
    %cst = arith.constant dense<0.000000e+00> : vector<34xf32>
    %1 = vector.multi_reduction <add>, %0, %cst [1] : vector<34x32xf32> to vector<34xf32>
    %2 = vector.shape_cast %1 : vector<34xf32> to vector<34x1xf32>
    %cst_1 = arith.constant 3.200000e+01 : f32
    %3 = vector.broadcast %cst_1 : f32 to vector<34x1xf32>
    %4 = arith.divf %2, %3 : vector<34x1xf32>
    %5 = vector.broadcast %4 : vector<34x1xf32> to vector<34x32xf32>
    %6 = arith.subf %0, %5 : vector<34x32xf32>
    %7 = arith.mulf %6, %6 : vector<34x32xf32>
    %cst_2 = arith.constant dense<0.000000e+00> : vector<34xf32>
    %8 = vector.multi_reduction <add>, %7, %cst_2 [1] : vector<34x32xf32> to vector<34xf32>
    %9 = vector.shape_cast %8 : vector<34xf32> to vector<34x1xf32>
    %cst_3 = arith.constant 3.200000e+01 : f32
    %10 = vector.broadcast %cst_3 : f32 to vector<34x1xf32>
    %11 = arith.divf %9, %10 : vector<34x1xf32>
    %cst_4 = arith.constant 9.99999974E-6 : f32
    %12 = vector.broadcast %cst_4 : f32 to vector<34x1xf32>
    %13 = arith.addf %11, %12 : vector<34x1xf32>
    %14 = math.rsqrt %13 : vector<34x1xf32>
    %15 = vector.broadcast %14 : vector<34x1xf32> to vector<34x32xf32>
    %16 = arith.mulf %6, %15 : vector<34x32xf32>
    %c0_5 = arith.constant 0 : index
    %c0_6 = arith.constant 0 : index
    %17 = vector.load %arg1[%c0_5, %c0_6] : memref<1x32xf32, #tpu.memory_space<vmem>>, vector<1x32xf32>
    %18 = vector.broadcast %17 : vector<1x32xf32> to vector<34x32xf32>
    %19 = arith.mulf %16, %18 : vector<34x32xf32>
    %c0_7 = arith.constant 0 : index
    %c0_8 = arith.constant 0 : index
    %20 = vector.load %arg2[%c0_7, %c0_8] : memref<1x32xf32, #tpu.memory_space<vmem>>, vector<1x32xf32>
    %21 = vector.broadcast %20 : vector<1x32xf32> to vector<34x32xf32>
    %22 = arith.addf %19, %21 : vector<34x32xf32>
    %c0_9 = arith.constant 0 : index
    %c0_10 = arith.constant 0 : index
    %23 = vector.load %arg3[%c0_9, %c0_10] : memref<34x32xf32, #tpu.memory_space<vmem>>, vector<34x32xf32>
    tpu.vector_store %arg3[%c0_9, %c0_10], %22 {strides = array<i32>} : memref<34x32xf32, #tpu.memory_space<vmem>>, vector<34x32xf32>,
    return
  }
}

module attributes {stable_mosaic.version = 11 : i64} {
  func.func @_linear_kernel(%arg0: memref<34x32xf32, #tpu.memory_space<vmem>>, %arg1: memref<32x96xf32, #tpu.memory_space<vmem>>, %arg2: memref<1x96xf32, #tpu.memory_space<vmem>>, %arg3: memref<34x96xf32, #tpu.memory_space<vmem>>) attributes {dimension_semantics = [], scalar_prefetch = 0 : i64, scratch_operands = 0 : i64, tpu.core_type = #tpu.core_type<tc>} {
    %c0 = arith.constant 0 : index
    %c0_0 = arith.constant 0 : index
    %0 = vector.load %arg0[%c0, %c0_0] : memref<34x32xf32, #tpu.memory_space<vmem>>, vector<34x32xf32>
    %c0_1 = arith.constant 0 : index
    %c0_2 = arith.constant 0 : index
    %1 = vector.load %arg1[%c0_1, %c0_2] : memref<32x96xf32, #tpu.memory_space<vmem>>, vector<32x96xf32>
    %cst = arith.constant dense<0.000000e+00> : vector<34x96xf32>
    %2 = tpu.matmul %0, %1, %cst {dimension_numbers = #tpu.dot_dimension_numbers<[1], [0], [0], [1], [0, 0, 1, 1], [], []>} : vector<34x32xf32>, vector<32x96xf32>, vector<34x96xf32> -> vector<34x96xf32>
    %c0_3 = arith.constant 0 : index
    %c0_4 = arith.constant 0 : index
    %3 = vector.load %arg2[%c0_3, %c0_4] : memref<1x96xf32, #tpu.memory_space<vmem>>, vector<1x96xf32>
    %4 = vector.broadcast %3 : vector<1x96xf32> to vector<34x96xf32>
    %5 = arith.addf %2, %4 : vector<34x96xf32>
    %c0_5 = arith.constant 0 : index
    %c0_6 = arith.constant 0 : index
    %6 = vector.load %arg3[%c0_5, %c0_6] : memref<34x96xf32, #tpu.memory_space<vmem>>, vector<34x96xf32>
    tpu.vector_store %arg3[%c0_5, %c0_6], %5 {strides = array<i32>} : memref<34x96xf32, #tpu.memory_space<vmem>>, vector<34x96xf32>,
    return
  }
}

module attributes {stable_mosaic.version = 11 : i64} {
  func.func @_mha_core_kernel(%arg0: i32, %arg1: memref<1x17x16xf32, #tpu.memory_space<vmem>>, %arg2: memref<1x17x16xf32, #tpu.memory_space<vmem>>, %arg3: memref<1x17x16xf32, #tpu.memory_space<vmem>>, %arg4: memref<1x17x16xf32, #tpu.memory_space<vmem>>) attributes {dimension_semantics = [#tpu.dimension_semantics<parallel>], iteration_bounds = array<i64: 4>, scalar_prefetch = 0 : i64, scratch_operands = 0 : i64, tpu.core_type = #tpu.core_type<tc>, window_params = [{transform_indices = @transform_0, window_bounds = array<i64: 1, 17, 16>}, {transform_indices = @transform_1, window_bounds = array<i64: 1, 17, 16>}, {transform_indices = @transform_2, window_bounds = array<i64: 1, 17, 16>}, {transform_indices = @transform_3, window_bounds = array<i64: 1, 17, 16>}]} {
    %c0 = arith.constant 0 : index
    %c0_0 = arith.constant 0 : index
    %c0_1 = arith.constant 0 : index
    %0 = vector.load %arg1[%c0, %c0_0, %c0_1] : memref<1x17x16xf32, #tpu.memory_space<vmem>>, vector<1x17x16xf32>
    %c0_2 = arith.constant 0 : index
    %c0_3 = arith.constant 0 : index
    %c0_4 = arith.constant 0 : index
    %1 = vector.load %arg2[%c0_2, %c0_3, %c0_4] : memref<1x17x16xf32, #tpu.memory_space<vmem>>, vector<1x17x16xf32>
    %c0_5 = arith.constant 0 : index
    %c0_6 = arith.constant 0 : index
    %c0_7 = arith.constant 0 : index
    %2 = vector.load %arg3[%c0_5, %c0_6, %c0_7] : memref<1x17x16xf32, #tpu.memory_space<vmem>>, vector<1x17x16xf32>
    "tpu.trace_start"() <{level = 10 : i32, message = "bqd,bkd->bqk"}> : () -> ()
    %cst = arith.constant dense<0.000000e+00> : vector<1x17x17xf32>
    %3 = tpu.matmul %0, %1, %cst {dimension_numbers = #tpu.dot_dimension_numbers<[2], [2], [1], [1], [0, 0, 0, 1, 1, 1], [0], [0]>} : vector<1x17x16xf32>, vector<1x17x16xf32>, vector<1x17x17xf32> -> vector<1x17x17xf32>
    "tpu.trace_stop"() : () -> ()
    %cst_8 = arith.constant 2.500000e-01 : f32
    %4 = vector.broadcast %cst_8 : f32 to vector<1x17x17xf32>
    %5 = arith.mulf %3, %4 : vector<1x17x17xf32>
    %cst_9 = arith.constant dense<0xFF800000> : vector<1x17xf32>
    %6 = vector.multi_reduction <maximumf>, %5, %cst_9 [2] : vector<1x17x17xf32> to vector<1x17xf32>
    %7 = vector.shape_cast %6 : vector<1x17xf32> to vector<1x17x1xf32>
    %8 = vector.broadcast %7 : vector<1x17x1xf32> to vector<1x17x17xf32>
    %9 = arith.subf %5, %8 : vector<1x17x17xf32>
    %10 = math.exp %9 : vector<1x17x17xf32>
    %cst_10 = arith.constant dense<0.000000e+00> : vector<1x17xf32>
    %11 = vector.multi_reduction <add>, %10, %cst_10 [2] : vector<1x17x17xf32> to vector<1x17xf32>
    %12 = vector.shape_cast %11 : vector<1x17xf32> to vector<1x17x1xf32>
    %13 = vector.broadcast %12 : vector<1x17x1xf32> to vector<1x17x17xf32>
    %14 = arith.divf %10, %13 : vector<1x17x17xf32>
    "tpu.trace_start"() <{level = 10 : i32, message = "bqk,bkd->bqd"}> : () -> ()
    %cst_11 = arith.constant dense<0.000000e+00> : vector<1x17x16xf32>
    %15 = tpu.matmul %14, %2, %cst_11 {dimension_numbers = #tpu.dot_dimension_numbers<[2], [1], [1], [2], [0, 0, 0, 1, 1, 2], [0], [0]>} : vector<1x17x17xf32>, vector<1x17x16xf32>, vector<1x17x16xf32> -> vector<1x17x16xf32>
    "tpu.trace_stop"() : () -> ()
    %c0_12 = arith.constant 0 : index
    %c0_13 = arith.constant 0 : index
    %c0_14 = arith.constant 0 : index
    %16 = vector.load %arg4[%c0_12, %c0_13, %c0_14] : memref<1x17x16xf32, #tpu.memory_space<vmem>>, vector<1x17x16xf32>
    tpu.vector_store %arg4[%c0_12, %c0_13, %c0_14], %15 {strides = array<i32>} : memref<1x17x16xf32, #tpu.memory_space<vmem>>, vector<1x17x16xf32>,
    return
  }
  func.func @transform_0(%arg0: i32) -> (i32, i32, i32) {
    %c0_i32 = arith.constant 0 : i32
    %c0_i32_0 = arith.constant 0 : i32
    %c0_i32_1 = arith.constant 0 : i32
    return %arg0, %c0_i32, %c0_i32_0 : i32, i32, i32
  }
  func.func @transform_1(%arg0: i32) -> (i32, i32, i32) {
    %c0_i32 = arith.constant 0 : i32
    %c0_i32_0 = arith.constant 0 : i32
    %c0_i32_1 = arith.constant 0 : i32
    return %arg0, %c0_i32, %c0_i32_0 : i32, i32, i32
  }
  func.func @transform_2(%arg0: i32) -> (i32, i32, i32) {
    %c0_i32 = arith.constant 0 : i32
    %c0_i32_0 = arith.constant 0 : i32
    %c0_i32_1 = arith.constant 0 : i32
    return %arg0, %c0_i32, %c0_i32_0 : i32, i32, i32
  }
  func.func @transform_3(%arg0: i32) -> (i32, i32, i32) {
    %c0_i32 = arith.constant 0 : i32
    %c0_i32_0 = arith.constant 0 : i32
    %c0_i32_1 = arith.constant 0 : i32
    return %arg0, %c0_i32, %c0_i32_0 : i32, i32, i32
  }
}

module attributes {stable_mosaic.version = 11 : i64} {
  func.func @_linear_kernel(%arg0: memref<34x32xf32, #tpu.memory_space<vmem>>, %arg1: memref<32x128xf32, #tpu.memory_space<vmem>>, %arg2: memref<1x128xf32, #tpu.memory_space<vmem>>, %arg3: memref<34x128xf32, #tpu.memory_space<vmem>>) attributes {dimension_semantics = [], scalar_prefetch = 0 : i64, scratch_operands = 0 : i64, tpu.core_type = #tpu.core_type<tc>} {
    %c0 = arith.constant 0 : index
    %c0_0 = arith.constant 0 : index
    %0 = vector.load %arg0[%c0, %c0_0] : memref<34x32xf32, #tpu.memory_space<vmem>>, vector<34x32xf32>
    %c0_1 = arith.constant 0 : index
    %c0_2 = arith.constant 0 : index
    %1 = vector.load %arg1[%c0_1, %c0_2] : memref<32x128xf32, #tpu.memory_space<vmem>>, vector<32x128xf32>
    %cst = arith.constant dense<0.000000e+00> : vector<34x128xf32>
    %2 = tpu.matmul %0, %1, %cst {dimension_numbers = #tpu.dot_dimension_numbers<[1], [0], [0], [1], [0, 0, 1, 1], [], []>} : vector<34x32xf32>, vector<32x128xf32>, vector<34x128xf32> -> vector<34x128xf32>
    %c0_3 = arith.constant 0 : index
    %c0_4 = arith.constant 0 : index
    %3 = vector.load %arg2[%c0_3, %c0_4] : memref<1x128xf32, #tpu.memory_space<vmem>>, vector<1x128xf32>
    %4 = vector.broadcast %3 : vector<1x128xf32> to vector<34x128xf32>
    %5 = arith.addf %2, %4 : vector<34x128xf32>
    %6 = arith.mulf %5, %5 : vector<34x128xf32>
    %7 = arith.mulf %5, %6 : vector<34x128xf32>
    %cst_5 = arith.constant 4.471500e-02 : f32
    %8 = vector.broadcast %cst_5 : f32 to vector<34x128xf32>
    %9 = arith.mulf %8, %7 : vector<34x128xf32>
    %10 = arith.addf %5, %9 : vector<34x128xf32>
    %cst_6 = arith.constant 0.797884583 : f32
    %11 = vector.broadcast %cst_6 : f32 to vector<34x128xf32>
    %12 = arith.mulf %11, %10 : vector<34x128xf32>
    %13 = math.tanh %12 : vector<34x128xf32>
    %cst_7 = arith.constant 1.000000e+00 : f32
    %14 = vector.broadcast %cst_7 : f32 to vector<34x128xf32>
    %15 = arith.addf %14, %13 : vector<34x128xf32>
    %cst_8 = arith.constant 5.000000e-01 : f32
    %16 = vector.broadcast %cst_8 : f32 to vector<34x128xf32>
    %17 = arith.mulf %16, %15 : vector<34x128xf32>
    %18 = arith.mulf %5, %17 : vector<34x128xf32>
    %c0_9 = arith.constant 0 : index
    %c0_10 = arith.constant 0 : index
    %19 = vector.load %arg3[%c0_9, %c0_10] : memref<34x128xf32, #tpu.memory_space<vmem>>, vector<34x128xf32>
    tpu.vector_store %arg3[%c0_9, %c0_10], %18 {strides = array<i32>} : memref<34x128xf32, #tpu.memory_space<vmem>>, vector<34x128xf32>,
    return
  }
}

module attributes {stable_mosaic.version = 11 : i64} {
  func.func @_linear_residual_kernel(%arg0: memref<34x32xf32, #tpu.memory_space<vmem>>, %arg1: memref<32x32xf32, #tpu.memory_space<vmem>>, %arg2: memref<1x32xf32, #tpu.memory_space<vmem>>, %arg3: memref<34x32xf32, #tpu.memory_space<vmem>>, %arg4: memref<34x32xf32, #tpu.memory_space<vmem>>) attributes {dimension_semantics = [], scalar_prefetch = 0 : i64, scratch_operands = 0 : i64, tpu.core_type = #tpu.core_type<tc>} {
    %c0 = arith.constant 0 : index
    %c0_0 = arith.constant 0 : index
    %0 = vector.load %arg0[%c0, %c0_0] : memref<34x32xf32, #tpu.memory_space<vmem>>, vector<34x32xf32>
    %c0_1 = arith.constant 0 : index
    %c0_2 = arith.constant 0 : index
    %1 = vector.load %arg1[%c0_1, %c0_2] : memref<32x32xf32, #tpu.memory_space<vmem>>, vector<32x32xf32>
    %cst = arith.constant dense<0.000000e+00> : vector<34x32xf32>
    %2 = tpu.matmul %0, %1, %cst {dimension_numbers = #tpu.dot_dimension_numbers<[1], [0], [0], [1], [0, 0, 1, 1], [], []>} : vector<34x32xf32>, vector<32x32xf32>, vector<34x32xf32> -> vector<34x32xf32>
    %c0_3 = arith.constant 0 : index
    %c0_4 = arith.constant 0 : index
    %3 = vector.load %arg2[%c0_3, %c0_4] : memref<1x32xf32, #tpu.memory_space<vmem>>, vector<1x32xf32>
    %4 = vector.broadcast %3 : vector<1x32xf32> to vector<34x32xf32>
    %5 = arith.addf %2, %4 : vector<34x32xf32>
    %c0_5 = arith.constant 0 : index
    %c0_6 = arith.constant 0 : index
    %6 = vector.load %arg3[%c0_5, %c0_6] : memref<34x32xf32, #tpu.memory_space<vmem>>, vector<34x32xf32>
    %7 = arith.addf %6, %5 : vector<34x32xf32>
    %c0_7 = arith.constant 0 : index
    %c0_8 = arith.constant 0 : index
    %8 = vector.load %arg4[%c0_7, %c0_8] : memref<34x32xf32, #tpu.memory_space<vmem>>, vector<34x32xf32>
    tpu.vector_store %arg4[%c0_7, %c0_8], %7 {strides = array<i32>} : memref<34x32xf32, #tpu.memory_space<vmem>>, vector<34x32xf32>,
    return
  }
}

module attributes {stable_mosaic.version = 11 : i64} {
  func.func @_linear_residual_kernel(%arg0: memref<34x128xf32, #tpu.memory_space<vmem>>, %arg1: memref<128x32xf32, #tpu.memory_space<vmem>>, %arg2: memref<1x32xf32, #tpu.memory_space<vmem>>, %arg3: memref<34x32xf32, #tpu.memory_space<vmem>>, %arg4: memref<34x32xf32, #tpu.memory_space<vmem>>) attributes {dimension_semantics = [], scalar_prefetch = 0 : i64, scratch_operands = 0 : i64, tpu.core_type = #tpu.core_type<tc>} {
    %c0 = arith.constant 0 : index
    %c0_0 = arith.constant 0 : index
    %0 = vector.load %arg0[%c0, %c0_0] : memref<34x128xf32, #tpu.memory_space<vmem>>, vector<34x128xf32>
    %c0_1 = arith.constant 0 : index
    %c0_2 = arith.constant 0 : index
    %1 = vector.load %arg1[%c0_1, %c0_2] : memref<128x32xf32, #tpu.memory_space<vmem>>, vector<128x32xf32>
    %cst = arith.constant dense<0.000000e+00> : vector<34x32xf32>
    %2 = tpu.matmul %0, %1, %cst {dimension_numbers = #tpu.dot_dimension_numbers<[1], [0], [0], [1], [0, 0, 1, 1], [], []>} : vector<34x128xf32>, vector<128x32xf32>, vector<34x32xf32> -> vector<34x32xf32>
    %c0_3 = arith.constant 0 : index
    %c0_4 = arith.constant 0 : index
    %3 = vector.load %arg2[%c0_3, %c0_4] : memref<1x32xf32, #tpu.memory_space<vmem>>, vector<1x32xf32>
    %4 = vector.broadcast %3 : vector<1x32xf32> to vector<34x32xf32>
    %5 = arith.addf %2, %4 : vector<34x32xf32>
    %c0_5 = arith.constant 0 : index
    %c0_6 = arith.constant 0 : index
    %6 = vector.load %arg3[%c0_5, %c0_6] : memref<34x32xf32, #tpu.memory_space<vmem>>, vector<34x32xf32>
    %7 = arith.addf %6, %5 : vector<34x32xf32>
    %c0_7 = arith.constant 0 : index
    %c0_8 = arith.constant 0 : index
    %8 = vector.load %arg4[%c0_7, %c0_8] : memref<34x32xf32, #tpu.memory_space<vmem>>, vector<34x32xf32>
    tpu.vector_store %arg4[%c0_7, %c0_8], %7 {strides = array<i32>} : memref<34x32xf32, #tpu.memory_space<vmem>>, vector<34x32xf32>,
    return
  }
}

module attributes {stable_mosaic.version = 11 : i64} {
  func.func @_layernorm_kernel(%arg0: memref<2x32xf32, #tpu.memory_space<vmem>>, %arg1: memref<1x32xf32, #tpu.memory_space<vmem>>, %arg2: memref<1x32xf32, #tpu.memory_space<vmem>>, %arg3: memref<2x32xf32, #tpu.memory_space<vmem>>) attributes {dimension_semantics = [], scalar_prefetch = 0 : i64, scratch_operands = 0 : i64, tpu.core_type = #tpu.core_type<tc>} {
    %c0 = arith.constant 0 : index
    %c0_0 = arith.constant 0 : index
    %0 = vector.load %arg0[%c0, %c0_0] : memref<2x32xf32, #tpu.memory_space<vmem>>, vector<2x32xf32>
    %cst = arith.constant dense<0.000000e+00> : vector<2xf32>
    %1 = vector.multi_reduction <add>, %0, %cst [1] : vector<2x32xf32> to vector<2xf32>
    %2 = vector.shape_cast %1 : vector<2xf32> to vector<2x1xf32>
    %cst_1 = arith.constant 3.200000e+01 : f32
    %3 = vector.broadcast %cst_1 : f32 to vector<2x1xf32>
    %4 = arith.divf %2, %3 : vector<2x1xf32>
    %5 = vector.broadcast %4 : vector<2x1xf32> to vector<2x32xf32>
    %6 = arith.subf %0, %5 : vector<2x32xf32>
    %7 = arith.mulf %6, %6 : vector<2x32xf32>
    %cst_2 = arith.constant dense<0.000000e+00> : vector<2xf32>
    %8 = vector.multi_reduction <add>, %7, %cst_2 [1] : vector<2x32xf32> to vector<2xf32>
    %9 = vector.shape_cast %8 : vector<2xf32> to vector<2x1xf32>
    %cst_3 = arith.constant 3.200000e+01 : f32
    %10 = vector.broadcast %cst_3 : f32 to vector<2x1xf32>
    %11 = arith.divf %9, %10 : vector<2x1xf32>
    %cst_4 = arith.constant 9.99999974E-6 : f32
    %12 = vector.broadcast %cst_4 : f32 to vector<2x1xf32>
    %13 = arith.addf %11, %12 : vector<2x1xf32>
    %14 = math.rsqrt %13 : vector<2x1xf32>
    %15 = vector.broadcast %14 : vector<2x1xf32> to vector<2x32xf32>
    %16 = arith.mulf %6, %15 : vector<2x32xf32>
    %c0_5 = arith.constant 0 : index
    %c0_6 = arith.constant 0 : index
    %17 = vector.load %arg1[%c0_5, %c0_6] : memref<1x32xf32, #tpu.memory_space<vmem>>, vector<1x32xf32>
    %18 = vector.broadcast %17 : vector<1x32xf32> to vector<2x32xf32>
    %19 = arith.mulf %16, %18 : vector<2x32xf32>
    %c0_7 = arith.constant 0 : index
    %c0_8 = arith.constant 0 : index
    %20 = vector.load %arg2[%c0_7, %c0_8] : memref<1x32xf32, #tpu.memory_space<vmem>>, vector<1x32xf32>
    %21 = vector.broadcast %20 : vector<1x32xf32> to vector<2x32xf32>
    %22 = arith.addf %19, %21 : vector<2x32xf32>
    %c0_9 = arith.constant 0 : index
    %c0_10 = arith.constant 0 : index
    %23 = vector.load %arg3[%c0_9, %c0_10] : memref<2x32xf32, #tpu.memory_space<vmem>>, vector<2x32xf32>
    tpu.vector_store %arg3[%c0_9, %c0_10], %22 {strides = array<i32>} : memref<2x32xf32, #tpu.memory_space<vmem>>, vector<2x32xf32>,
    return
  }
}

module attributes {stable_mosaic.version = 11 : i64} {
  func.func @_linear_kernel(%arg0: memref<2x32xf32, #tpu.memory_space<vmem>>, %arg1: memref<32x32xf32, #tpu.memory_space<vmem>>, %arg2: memref<1x32xf32, #tpu.memory_space<vmem>>, %arg3: memref<2x32xf32, #tpu.memory_space<vmem>>) attributes {dimension_semantics = [], scalar_prefetch = 0 : i64, scratch_operands = 0 : i64, tpu.core_type = #tpu.core_type<tc>} {
    %c0 = arith.constant 0 : index
    %c0_0 = arith.constant 0 : index
    %0 = vector.load %arg0[%c0, %c0_0] : memref<2x32xf32, #tpu.memory_space<vmem>>, vector<2x32xf32>
    %c0_1 = arith.constant 0 : index
    %c0_2 = arith.constant 0 : index
    %1 = vector.load %arg1[%c0_1, %c0_2] : memref<32x32xf32, #tpu.memory_space<vmem>>, vector<32x32xf32>
    %cst = arith.constant dense<0.000000e+00> : vector<2x32xf32>
    %2 = tpu.matmul %0, %1, %cst {dimension_numbers = #tpu.dot_dimension_numbers<[1], [0], [0], [1], [0, 0, 1, 1], [], []>} : vector<2x32xf32>, vector<32x32xf32>, vector<2x32xf32> -> vector<2x32xf32>
    %c0_3 = arith.constant 0 : index
    %c0_4 = arith.constant 0 : index
    %3 = vector.load %arg2[%c0_3, %c0_4] : memref<1x32xf32, #tpu.memory_space<vmem>>, vector<1x32xf32>
    %4 = vector.broadcast %3 : vector<1x32xf32> to vector<2x32xf32>
    %5 = arith.addf %2, %4 : vector<2x32xf32>
    %c0_5 = arith.constant 0 : index
    %c0_6 = arith.constant 0 : index
    %6 = vector.load %arg3[%c0_5, %c0_6] : memref<2x32xf32, #tpu.memory_space<vmem>>, vector<2x32xf32>
    tpu.vector_store %arg3[%c0_5, %c0_6], %5 {strides = array<i32>} : memref<2x32xf32, #tpu.memory_space<vmem>>, vector<2x32xf32>,
    return
  }
}

</mosaic_0001>

<llo_original>
// kernel: visual_transformer_forward.19
$region0: #{visual_transformer_forward.19}
  #allocation0 [shape = 'u32[]', space=smem, size = 0x4, offset = 0x4, fixed_abs, tag = 'smem constant byte address 0x4 - core index']
  #allocation1 [shape = 'u32[144,128]{1,0:T(1,128)}', space=vmem, size = 0x12000, scoped, tag = 'internal scratch']
  %s0 = inlined_call_operand.vmem [shape: f32[34,32], index: 0, kind: input, shape index: {}]
  %s1 = inlined_call_operand.vmem [shape: f32[1,32], index: 1, kind: input, shape index: {}]
  %s2 = inlined_call_operand.vmem [shape: f32[1,32], index: 2, kind: input, shape index: {}]
  %s3 = inlined_call_operand.vmem [shape: f32[34,32], index: 3, kind: output, shape index: {}]
  %s4 = sld [smem:[#allocation0]]
  $region22: #{visual_transformer_forward.19} parent=0
    _
  %s6 = ssub.s32 1, %s4
  %s7 = scalar_select 0, %s6, %s4
  // Predicated region
  $region2: #{visual_transformer_forward.19} parent=0 // pred_check
    _
  $region3: #{visual_transformer_forward.19} parent=0 // pred_check_branch
    %9 = sbr.rel (0) target = $region5
  $region4: #{visual_transformer_forward.19} parent=0 // pred_region
    _
  $region5: #{visual_transformer_forward.19} parent=0 // pred_fallthru
    _
  // Predicated region
  $region6: #{visual_transformer_forward.19} parent=0 // pred_check
    _
  $region7: #{visual_transformer_forward.19} parent=0 // pred_check_branch
    %11 = sbr.rel (0) target = $region9
  $region8: #{visual_transformer_forward.19} parent=0 // pred_region
    _
  $region9: #{visual_transformer_forward.19} parent=0 // pred_fallthru
    _
  // Predicated region
  $region10: #{visual_transformer_forward.19} parent=0 // pred_check
    _
  $region11: #{visual_transformer_forward.19} parent=0 // pred_check_branch
    %13 = sbr.rel (0) target = $region13
  $region12: #{visual_transformer_forward.19} parent=0 // pred_region
    _
  $region13: #{visual_transformer_forward.19} parent=0 // pred_fallthru
    _
  %v14 = vld [vmem:[%s0] sm:$0xff]
  %v15 = vld [vmem:[%s0 + $0x8] sm:$0xff]
  %v16 = vld [vmem:[%s0 + $0x10] sm:$0xff]
  %v17 = vld [vmem:[%s0 + $0x18] sm:$0xff]
  %v18 = vld [vmem:[%s0 + $0x20] sm:$0x3]
  %vm19 = vcmask 261120
  %v20 = vsel %vm19, %v14, 0.0
  %21 = vadd.xlane.f32.xlu0 %v20
  %v22 = vpop.xlane.xlu0 %21
  %v23 = vsel %vm19, %v15, 0.0
  %24 = vadd.xlane.f32.xlu0 %v23
  %v25 = vpop.xlane.xlu0 %24
  %v26 = vsel %vm19, %v16, 0.0
  %27 = vadd.xlane.f32.xlu0 %v26
  %v28 = vpop.xlane.xlu0 %27
  %v29 = vsel %vm19, %v17, 0.0
  %30 = vadd.xlane.f32.xlu0 %v29
  %v31 = vpop.xlane.xlu0 %30
  %vm32 = vcmask 254976
  %v33 = vsel %vm32, %v18, 0.0
  %34 = vadd.xlane.f32.xlu0 %v33
  %v35 = vpop.xlane.xlu0 %34
  %v36 = vrcp.pop 32.0
  %v37 = vmul.f32 %v22, %v36
  %v38 = vmul.f32 %v25, %v36
  %v39 = vmul.f32 %v28, %v36
  %v40 = vmul.f32 %v31, %v36
  %v41 = vmul.f32 %v35, %v36
  %v42 = vsub.f32 %v14, %v37
  %v43 = vsub.f32 %v15, %v38
  %v44 = vsub.f32 %v16, %v39
  %v45 = vsub.f32 %v17, %v40
  %v46 = vsub.f32 %v18, %v41
  %v47 = vmul.f32 %v42, %v42
  %v48 = vmul.f32 %v43, %v43
  %v49 = vmul.f32 %v44, %v44
  %v50 = vmul.f32 %v45, %v45
  %v51 = vmul.f32 %v46, %v46
  %v52 = vsel %vm19, %v47, 0.0
  %53 = vadd.xlane.f32.xlu0 %v52
  %v54 = vpop.xlane.xlu0 %53
  %v55 = vsel %vm19, %v48, 0.0
  %56 = vadd.xlane.f32.xlu0 %v55
  %v57 = vpop.xlane.xlu0 %56
  %v58 = vsel %vm19, %v49, 0.0
  %59 = vadd.xlane.f32.xlu0 %v58
  %v60 = vpop.xlane.xlu0 %59
  %v61 = vsel %vm19, %v50, 0.0
  %62 = vadd.xlane.f32.xlu0 %v61
  %v63 = vpop.xlane.xlu0 %62
  %v64 = vsel %vm32, %v51, 0.0
  %65 = vadd.xlane.f32.xlu0 %v64
  %v66 = vpop.xlane.xlu0 %65
  %v67 = vmul.f32 %v54, %v36
  %v68 = vmul.f32 %v57, %v36
  %v69 = vmul.f32 %v60, %v36
  %v70 = vmul.f32 %v63, %v36
  %v71 = vmul.f32 %v66, %v36
  %v72 = vadd.f32 %v67, 1e-05
  %v73 = vadd.f32 %v68, 1e-05
  %v74 = vadd.f32 %v69, 1e-05
  %v75 = vadd.f32 %v70, 1e-05
  %v76 = vadd.f32 %v71, 1e-05
  %v77 = vrsqrt.pop %v72
  %v78 = vrsqrt.pop %v73
  %v79 = vrsqrt.pop %v74
  %v80 = vrsqrt.pop %v75
  %v81 = vrsqrt.pop %v76
  %v82 = vmul.f32 %v42, %v77
  %v83 = vmul.f32 %v43, %v78
  %v84 = vmul.f32 %v44, %v79
  %v85 = vmul.f32 %v45, %v80
  %v86 = vmul.f32 %v46, %v81
  %v87 = vld [vmem:[%s1] sm:$0x1]
  %v89 = vlaneseq
  %v90 = vshrl.u32 %v89, 7
  %v91 = vsub.s32 0, %v90
  %v92 = vrot.slane %v87, %v91
  %v94 = vmul.f32 %v82, %v92
  %v95 = vmul.f32 %v83, %v92
  %v96 = vmul.f32 %v84, %v92
  %v97 = vmul.f32 %v85, %v92
  %v98 = vmul.f32 %v86, %v92
  %v99 = vld [vmem:[%s2] sm:$0x1]
  %v101 = vlaneseq
  %v102 = vshrl.u32 %v101, 7
  %v103 = vsub.s32 0, %v102
  %v104 = vrot.slane %v99, %v103
  %v106 = vadd.f32 %v94, %v104
  %v107 = vadd.f32 %v95, %v104
  %v108 = vadd.f32 %v96, %v104
  %v109 = vadd.f32 %v97, %v104
  %v110 = vadd.f32 %v98, %v104
  %111 = vst.msk [vmem:[%s3] sm:$0xff] %vm19, %v106
  %112 = vst.msk [vmem:[%s3 + $0x8] sm:$0xff] %vm19, %v107
  %113 = vst.msk [vmem:[%s3 + $0x10] sm:$0xff] %vm19, %v108
  %114 = vst.msk [vmem:[%s3 + $0x18] sm:$0xff] %vm19, %v109
  %115 = vst.msk [vmem:[%s3 + $0x20] sm:$0x3] %vm32, %v110
  // Predicated region
  $region14: #{visual_transformer_forward.19} parent=0 // pred_check
    _
  $region15: #{visual_transformer_forward.19} parent=0 // pred_check_branch
    %117 = sbr.rel (0) target = $region17
  $region16: #{visual_transformer_forward.19} parent=0 // pred_region
    _
  $region17: #{visual_transformer_forward.19} parent=0 // pred_fallthru
    _
  // Predicated region
  $region18: #{visual_transformer_forward.19} parent=0 // pred_check
    _
  $region19: #{visual_transformer_forward.19} parent=0 // pred_check_branch
    %119 = sbr.rel (0) target = $region21
  $region20: #{visual_transformer_forward.19} parent=0 // pred_region
    _
  $region21: #{visual_transformer_forward.19} parent=0 // pred_fallthru
    _

// kernel: visual_transformer_forward.18
$region0: #{visual_transformer_forward.18}
  #allocation0 [shape = 'u32[]', space=smem, size = 0x4, offset = 0x4, fixed_abs, tag = 'smem constant byte address 0x4 - core index']
  #allocation1 [shape = 'u32[144,128]{1,0:T(1,128)}', space=vmem, size = 0x12000, scoped, tag = 'internal scratch']
  %s0 = inlined_call_operand.vmem [shape: f32[32,48], index: 0, kind: input, shape index: {}]
  %s1 = inlined_call_operand.vmem [shape: f32[48,32], index: 1, kind: input, shape index: {}]
  %s2 = inlined_call_operand.vmem [shape: f32[1,32], index: 2, kind: input, shape index: {}]
  %s3 = inlined_call_operand.vmem [shape: f32[32,32], index: 3, kind: output, shape index: {}]
  %s4 = sld [smem:[#allocation0]]
  $region22: #{visual_transformer_forward.18} parent=0
    _
  %s6 = ssub.s32 1, %s4
  %s7 = scalar_select 0, %s6, %s4
  // Predicated region
  $region2: #{visual_transformer_forward.18} parent=0 // pred_check
    _
  $region3: #{visual_transformer_forward.18} parent=0 // pred_check_branch
    %9 = sbr.rel (0) target = $region5
  $region4: #{visual_transformer_forward.18} parent=0 // pred_region
    _
  $region5: #{visual_transformer_forward.18} parent=0 // pred_fallthru
    _
  // Predicated region
  $region6: #{visual_transformer_forward.18} parent=0 // pred_check
    _
  $region7: #{visual_transformer_forward.18} parent=0 // pred_check_branch
    %11 = sbr.rel (0) target = $region9
  $region8: #{visual_transformer_forward.18} parent=0 // pred_region
    _
  $region9: #{visual_transformer_forward.18} parent=0 // pred_fallthru
    _
  // Predicated region
  $region10: #{visual_transformer_forward.18} parent=0 // pred_check
    _
  $region11: #{visual_transformer_forward.18} parent=0 // pred_check_branch
    %13 = sbr.rel (0) target = $region13
  $region12: #{visual_transformer_forward.18} parent=0 // pred_region
    _
  $region13: #{visual_transformer_forward.18} parent=0 // pred_fallthru
    _
  %v14 = vld [vmem:[%s0] sm:$0xff]
  %v15 = vld [vmem:[%s0 + $0x8] sm:$0xff]
  %v16 = vld [vmem:[%s0 + $0x10] sm:$0xff]
  %v17 = vld [vmem:[%s0 + $0x18] sm:$0xff]
  %v18 = vld [vmem:[%s1] sm:$0xff]
  %v19 = vld [vmem:[%s1 + $0x8] sm:$0xff]
  %v20 = vld [vmem:[%s1 + $0x10] sm:$0xff]
  %v21 = vld [vmem:[%s1 + $0x18] sm:$0xff]
  %v22 = vld [vmem:[%s1 + $0x20] sm:$0xff]
  %v23 = vld [vmem:[%s1 + $0x28] sm:$0xff]
  %v24 = vld [vmem:[%s2] sm:$0x1]
  %v26 = vlaneseq
  %v27 = vshrl.u32 %v26, 7
  %v28 = vsub.s32 0, %v27
  %v29 = vrot.slane %v24, %v28
  %vm31 = vcmask 392192
  %v33 = vsel %vm31, %v14, 0
  %v36 = vsel %vm31, %v15, 0
  %v39 = vsel %vm31, %v16, 0
  %v42 = vsel %vm31, %v17, 0
  %44 = vmatprep.subr.mxu0 0.0
  %45 = vmatpush1.msra.mxu0 %v18
  %46 = vmatprep.subr.mxu0 0.0
  %47 = vmatpush1.msra.mxu0 %v19
  %48 = vmatprep.subr.mxu0 0.0
  %49 = vmatpush1.msra.mxu0 %v20
  %50 = vmatprep.subr.mxu0 0.0
  %51 = vmatpush1.msra.mxu0 %v21
  %52 = vmatprep.subr.mxu0 0.0
  %53 = vmatpush1.msra.mxu0 %v22
  %54 = vmatprep.subr.mxu0 0.0
  %55 = vmatpush1.msra.mxu0 %v23
  %56 = vmatprep.subr.mxu0 0.0
  %57 = vmatpush1.msra.mxu0 0.0
  %58 = vmatprep.subr.mxu0 0.0
  %59 = vmatpush1.msra.mxu0 0.0
  %60 = vmatprep.subr.mxu0 0.0
  %61 = vmatpush1.msra.mxu0 0.0
  %62 = vmatprep.subr.mxu0 0.0
  %63 = vmatpush1.msra.mxu0 0.0
  %64 = vmatprep.subr.mxu0 0.0
  %65 = vmatpush1.msra.mxu0 0.0
  %66 = vmatprep.subr.mxu0 0.0
  %67 = vmatpush1.msra.mxu0 0.0
  %68 = vmatprep.subr.mxu0 0.0
  %69 = vmatpush1.msra.mxu0 0.0
  %70 = vmatprep.subr.mxu0 0.0
  %71 = vmatpush1.msra.mxu0 0.0
  %72 = vmatprep.subr.mxu0 0.0
  %73 = vmatpush1.msra.mxu0 0.0
  %74 = vmatprep.subr.mxu0 0.0
  %75 = vmatpush1.msra.mxu0 0.0
  %76 = vmatprep.subr.mxu0 0.0
  %77 = vmatpush1.msra.mxu0 0.0
  %78 = vmatprep.subr.mxu0 0.0
  %79 = vmatpush1.msra.mxu0 0.0
  %80 = vmatprep.subr.mxu0 0.0
  %81 = vmatpush1.msra.mxu0 0.0
  %82 = vmatprep.subr.mxu0 0.0
  %83 = vmatpush1.msra.mxu0 0.0
  %84 = vmatprep.subr.mxu0 0.0
  %85 = vmatpush1.msra.mxu0 0.0
  %86 = vmatprep.subr.mxu0 0.0
  %87 = vmatpush1.msra.mxu0 0.0
  %88 = vmatprep.subr.mxu0 0.0
  %89 = vmatpush1.msra.mxu0 0.0
  %90 = vmatprep.subr.mxu0 0.0
  %91 = vmatpush1.msra.mxu0 0.0
  %92 = vmatprep.subr.mxu0 0.0
  %93 = vmatpush1.msra.mxu0 0.0
  %94 = vmatprep.subr.mxu0 0.0
  %95 = vmatpush1.msra.mxu0 0.0
  %96 = vmatprep.subr.mxu0 0.0
  %97 = vmatpush1.msra.mxu0 0.0
  %98 = vmatprep.subr.mxu0 0.0
  %99 = vmatpush1.msra.mxu0 0.0
  %100 = vmatprep.subr.mxu0 0.0
  %101 = vmatpush1.msra.mxu0 0.0
  %102 = vmatprep.subr.mxu0 0.0
  %103 = vmatpush1.msra.mxu0 0.0
  %104 = vmatprep.subr.mxu0 0.0
  %105 = vmatpush1.msra.mxu0 0.0
  %106 = vmatprep.subr.mxu0 0.0
  %107 = vmatpush1.msra.mxu0 0.0
  %108 = vmatprep.mubr.f32.mxu0 0.0
  %109 = vmatmul.mubr.f32.gmra.mrb[0].mxu0 %v33
  %v110 = vpop.f32.mrb[0].mxu0
  %v111 = vadd.f32 %v29, %v110
  %v112 = vpop.f32.mrb[0].mxu0
  %113 = vmatprep.mubr.f32.mxu0 0.0
  %114 = vmatmul.mubr.f32.gmra.mrb[0].mxu0 %v36
  %v115 = vpop.f32.mrb[0].mxu0
  %v116 = vadd.f32 %v29, %v115
  %v117 = vpop.f32.mrb[0].mxu0
  %118 = vmatprep.mubr.f32.mxu0 0.0
  %119 = vmatmul.mubr.f32.gmra.mrb[0].mxu0 %v39
  %v120 = vpop.f32.mrb[0].mxu0
  %v121 = vadd.f32 %v29, %v120
  %v122 = vpop.f32.mrb[0].mxu0
  %123 = vmatprep.mubr.f32.mxu0 0.0
  %124 = vmatmul.mubr.f32.gmra.mrb[0].mxu0 %v42
  %v125 = vpop.f32.mrb[0].mxu0
  %v126 = vadd.f32 %v29, %v125
  %v127 = vpop.f32.mrb[0].mxu0
  %128 = vdwg.mxu0
  %vm129 = vcmask 261120
  %130 = vst.msk [vmem:[%s3] sm:$0xff] %vm129, %v111
  %131 = vst.msk [vmem:[%s3 + $0x8] sm:$0xff] %vm129, %v116
  %132 = vst.msk [vmem:[%s3 + $0x10] sm:$0xff] %vm129, %v121
  %133 = vst.msk [vmem:[%s3 + $0x18] sm:$0xff] %vm129, %v126
  // Predicated region
  $region14: #{visual_transformer_forward.18} parent=0 // pred_check
    _
  $region15: #{visual_transformer_forward.18} parent=0 // pred_check_branch
    %135 = sbr.rel (0) target = $region17
  $region16: #{visual_transformer_forward.18} parent=0 // pred_region
    _
  $region17: #{visual_transformer_forward.18} parent=0 // pred_fallthru
    _
  // Predicated region
  $region18: #{visual_transformer_forward.18} parent=0 // pred_check
    _
  $region19: #{visual_transformer_forward.18} parent=0 // pred_check_branch
    %137 = sbr.rel (0) target = $region21
  $region20: #{visual_transformer_forward.18} parent=0 // pred_region
    _
  $region21: #{visual_transformer_forward.18} parent=0 // pred_fallthru
    _

// kernel: visual_transformer_forward.21
$region0: #{visual_transformer_forward.21}
  #allocation0 [shape = 'u32[]', space=smem, size = 0x4, offset = 0x4, fixed_abs, tag = 'smem constant byte address 0x4 - core index']
  #allocation1 [shape = 'u32[144,128]{1,0:T(1,128)}', space=vmem, size = 0x12000, scoped, tag = 'internal scratch']
  %s0 = inlined_call_operand.vmem [shape: f32[34,32], index: 0, kind: input, shape index: {}]
  %s1 = inlined_call_operand.vmem [shape: f32[32,96], index: 1, kind: input, shape index: {}]
  %s2 = inlined_call_operand.vmem [shape: f32[1,96], index: 2, kind: input, shape index: {}]
  %s3 = inlined_call_operand.vmem [shape: f32[34,96], index: 3, kind: output, shape index: {}]
  %s4 = sld [smem:[#allocation0]]
  $region22: #{visual_transformer_forward.21} parent=0
    _
  %s6 = ssub.s32 1, %s4
  %s7 = scalar_select 0, %s6, %s4
  // Predicated region
  $region2: #{visual_transformer_forward.21} parent=0 // pred_check
    _
  $region3: #{visual_transformer_forward.21} parent=0 // pred_check_branch
    %9 = sbr.rel (0) target = $region5
  $region4: #{visual_transformer_forward.21} parent=0 // pred_region
    _
  $region5: #{visual_transformer_forward.21} parent=0 // pred_fallthru
    _
  // Predicated region
  $region6: #{visual_transformer_forward.21} parent=0 // pred_check
    _
  $region7: #{visual_transformer_forward.21} parent=0 // pred_check_branch
    %11 = sbr.rel (0) target = $region9
  $region8: #{visual_transformer_forward.21} parent=0 // pred_region
    _
  $region9: #{visual_transformer_forward.21} parent=0 // pred_fallthru
    _
  // Predicated region
  $region10: #{visual_transformer_forward.21} parent=0 // pred_check
    _
  $region11: #{visual_transformer_forward.21} parent=0 // pred_check_branch
    %13 = sbr.rel (0) target = $region13
  $region12: #{visual_transformer_forward.21} parent=0 // pred_region
    _
  $region13: #{visual_transformer_forward.21} parent=0 // pred_fallthru
    _
  %v14 = vld [vmem:[%s0] sm:$0xff]
  %v15 = vld [vmem:[%s0 + $0x8] sm:$0xff]
  %v16 = vld [vmem:[%s0 + $0x10] sm:$0xff]
  %v17 = vld [vmem:[%s0 + $0x18] sm:$0xff]
  %v18 = vld [vmem:[%s0 + $0x20] sm:$0x3]
  %v19 = vld [vmem:[%s1] sm:$0xff]
  %v20 = vld [vmem:[%s1 + $0x8] sm:$0xff]
  %v21 = vld [vmem:[%s1 + $0x10] sm:$0xff]
  %v22 = vld [vmem:[%s1 + $0x18] sm:$0xff]
  %v23 = vld [vmem:[%s2] sm:$0x1]
  %v25 = vlaneseq
  %v26 = vshrl.u32 %v25, 7
  %v27 = vsub.s32 0, %v26
  %v28 = vrot.slane %v23, %v27
  %vm30 = vcmask 261120
  %v32 = vsel %vm30, %v14, 0
  %v35 = vsel %vm30, %v15, 0
  %v38 = vsel %vm30, %v16, 0
  %v41 = vsel %vm30, %v17, 0
  %v44 = vsel %vm30, %v18, 0
  %46 = vmatprep.subr.mxu0 0.0
  %47 = vmatpush1.msra.mxu0 %v19
  %48 = vmatprep.subr.mxu0 0.0
  %49 = vmatpush1.msra.mxu0 %v20
  %50 = vmatprep.subr.mxu0 0.0
  %51 = vmatpush1.msra.mxu0 %v21
  %52 = vmatprep.subr.mxu0 0.0
  %53 = vmatpush1.msra.mxu0 %v22
  %54 = vmatprep.subr.mxu0 0.0
  %55 = vmatpush1.msra.mxu0 0.0
  %56 = vmatprep.subr.mxu0 0.0
  %57 = vmatpush1.msra.mxu0 0.0
  %58 = vmatprep.subr.mxu0 0.0
  %59 = vmatpush1.msra.mxu0 0.0
  %60 = vmatprep.subr.mxu0 0.0
  %61 = vmatpush1.msra.mxu0 0.0
  %62 = vmatprep.subr.mxu0 0.0
  %63 = vmatpush1.msra.mxu0 0.0
  %64 = vmatprep.subr.mxu0 0.0
  %65 = vmatpush1.msra.mxu0 0.0
  %66 = vmatprep.subr.mxu0 0.0
  %67 = vmatpush1.msra.mxu0 0.0
  %68 = vmatprep.subr.mxu0 0.0
  %69 = vmatpush1.msra.mxu0 0.0
  %70 = vmatprep.subr.mxu0 0.0
  %71 = vmatpush1.msra.mxu0 0.0
  %72 = vmatprep.subr.mxu0 0.0
  %73 = vmatpush1.msra.mxu0 0.0
  %74 = vmatprep.subr.mxu0 0.0
  %75 = vmatpush1.msra.mxu0 0.0
  %76 = vmatprep.subr.mxu0 0.0
  %77 = vmatpush1.msra.mxu0 0.0
  %78 = vmatprep.subr.mxu0 0.0
  %79 = vmatpush1.msra.mxu0 0.0
  %80 = vmatprep.subr.mxu0 0.0
  %81 = vmatpush1.msra.mxu0 0.0
  %82 = vmatprep.subr.mxu0 0.0
  %83 = vmatpush1.msra.mxu0 0.0
  %84 = vmatprep.subr.mxu0 0.0
  %85 = vmatpush1.msra.mxu0 0.0
  %86 = vmatprep.subr.mxu0 0.0
  %87 = vmatpush1.msra.mxu0 0.0
  %88 = vmatprep.subr.mxu0 0.0
  %89 = vmatpush1.msra.mxu0 0.0
  %90 = vmatprep.subr.mxu0 0.0
  %91 = vmatpush1.msra.mxu0 0.0
  %92 = vmatprep.subr.mxu0 0.0
  %93 = vmatpush1.msra.mxu0 0.0
  %94 = vmatprep.subr.mxu0 0.0
  %95 = vmatpush1.msra.mxu0 0.0
  %96 = vmatprep.subr.mxu0 0.0
  %97 = vmatpush1.msra.mxu0 0.0
  %98 = vmatprep.subr.mxu0 0.0
  %99 = vmatpush1.msra.mxu0 0.0
  %100 = vmatprep.subr.mxu0 0.0
  %101 = vmatpush1.msra.mxu0 0.0
  %102 = vmatprep.subr.mxu0 0.0
  %103 = vmatpush1.msra.mxu0 0.0
  %104 = vmatprep.subr.mxu0 0.0
  %105 = vmatpush1.msra.mxu0 0.0
  %106 = vmatprep.subr.mxu0 0.0
  %107 = vmatpush1.msra.mxu0 0.0
  %108 = vmatprep.subr.mxu0 0.0
  %109 = vmatpush1.msra.mxu0 0.0
  %110 = vmatprep.mubr.f32.mxu0 0.0
  %111 = vmatmul.mubr.f32.gmra.mrb[0].mxu0 %v32
  %v112 = vpop.f32.mrb[0].mxu0
  %v113 = vadd.f32 %v28, %v112
  %v114 = vpop.f32.mrb[0].mxu0
  %115 = vmatprep.mubr.f32.mxu0 0.0
  %116 = vmatmul.mubr.f32.gmra.mrb[0].mxu0 %v35
  %v117 = vpop.f32.mrb[0].mxu0
  %v118 = vadd.f32 %v28, %v117
  %v119 = vpop.f32.mrb[0].mxu0
  %120 = vmatprep.mubr.f32.mxu0 0.0
  %121 = vmatmul.mubr.f32.gmra.mrb[0].mxu0 %v38
  %v122 = vpop.f32.mrb[0].mxu0
  %v123 = vadd.f32 %v28, %v122
  %v124 = vpop.f32.mrb[0].mxu0
  %125 = vmatprep.mubr.f32.mxu0 0.0
  %126 = vmatmul.mubr.f32.gmra.mrb[0].mxu0 %v41
  %v127 = vpop.f32.mrb[0].mxu0
  %v128 = vadd.f32 %v28, %v127
  %v129 = vpop.f32.mrb[0].mxu0
  %130 = vmatprep.mubr.f32.mxu0 0.0
  %131 = vmatmul.mubr.f32.gmra.mrb[0].mxu0 %v44
  %v132 = vpop.f32.mrb[0].mxu0
  %v133 = vadd.f32 %v28, %v132
  %v134 = vpop.f32.mrb[0].mxu0
  %135 = vdwg.mxu0
  %vm136 = vcmask 785408
  %137 = vst.msk [vmem:[%s3] sm:$0xff] %vm136, %v113
  %138 = vst.msk [vmem:[%s3 + $0x8] sm:$0xff] %vm136, %v118
  %139 = vst.msk [vmem:[%s3 + $0x10] sm:$0xff] %vm136, %v123
  %140 = vst.msk [vmem:[%s3 + $0x18] sm:$0xff] %vm136, %v128
  %vm141 = vcmask 779264
  %142 = vst.msk [vmem:[%s3 + $0x20] sm:$0x3] %vm141, %v133
  // Predicated region
  $region14: #{visual_transformer_forward.21} parent=0 // pred_check
    _
  $region15: #{visual_transformer_forward.21} parent=0 // pred_check_branch
    %144 = sbr.rel (0) target = $region17
  $region16: #{visual_transformer_forward.21} parent=0 // pred_region
    _
  $region17: #{visual_transformer_forward.21} parent=0 // pred_fallthru
    _
  // Predicated region
  $region18: #{visual_transformer_forward.21} parent=0 // pred_check
    _
  $region19: #{visual_transformer_forward.21} parent=0 // pred_check_branch
    %146 = sbr.rel (0) target = $region21
  $region20: #{visual_transformer_forward.21} parent=0 // pred_region
    _
  $region21: #{visual_transformer_forward.21} parent=0 // pred_fallthru
    _

// kernel: visual_transformer_forward.22
$region0: #{visual_transformer_forward.22}
  #allocation0 [shape = 'u32[]', space=smem, size = 0x4, offset = 0x4, fixed_abs, tag = 'smem constant byte address 0x4 - core index']
  #allocation1 [shape = 'u32[144,128]{1,0:T(1,128)}', space=vmem, size = 0x12000, scoped, tag = 'internal scratch']
  %s0 = inlined_call_operand.vmem [shape: f32[4,17,16], index: 0, kind: input, shape index: {}]
  %s1 = inlined_call_operand.vmem [shape: f32[4,17,16], index: 1, kind: input, shape index: {}]
  %s2 = inlined_call_operand.vmem [shape: f32[4,17,16], index: 2, kind: input, shape index: {}]
  %s3 = inlined_call_operand.vmem [shape: f32[4,17,16], index: 3, kind: output, shape index: {}]
  %s4 = sld [smem:[#allocation0]]
  $region45: #{visual_transformer_forward.22} parent=0
    _
  %s6 = ssub.s32 1, %s4
  %s7 = scalar_select 0, %s6, %s4
  loop: start=0, step=1, limit=6
  $region2: #{visual_transformer_forward.22} parent=0 // loop_pre_header
    _
  $region3: #{visual_transformer_forward.22} parent=0 // loop_header
    %s9 = sphi 0, %s13
    %p10 = scmp.ge.s32.totalorder %s9, 6
    %s19 = sphi 0, %s21
    %s22 = sphi 0, %s19
    %s23 = sphi 0, %s22
    %s39 = sphi 0, %s23
    %s45 = sphi 0, %s47
    %s48 = sphi 0, %s45
    %s49 = sphi 0, %s48
    %s65 = sphi 0, %s49
    %s71 = sphi 0, %s73
    %s74 = sphi 0, %s71
    %s75 = sphi 0, %s74
    %s91 = sphi 0, %s75
    %s97 = sphi 0, %s99
    %s100 = sphi 0, %s97
    %s101 = sphi 0, %s100
    %s117 = sphi 0, %s101
  $region4: #{visual_transformer_forward.22} parent=0 // loop_header_branch
    %12 = sbr.rel (%p10) target = $region8
  $region5: #{visual_transformer_forward.22} parent=0 // loop_body
    %s14 = ssub.s32 %s9, 1
    %s15 = ssub.s32 %s9, 2
    %s16 = sadd.s32 %s9, 1
    %s17 = ssub.s32 %s9, %s16
    %p18 = scmp.eq.s32.totalorder %s17, 0
    %s20 = sadd.s32 %s19, 1
    %s21 = scalar_select %p18, %s19, %s20
    %p24 = pneg %p18
    %p25 = scmp.eq.s32.totalorder %s9, 3
    %p26 = por %p24, %p25
    %p27 = scmp.ne.s32.totalorder %s19, %s22
    %p28 = scmp.eq.s32.totalorder %s9, 0
    %p29 = por %p27, %p28
    %p30 = scmp.ne.s32.totalorder %s19, %s22
    %p31 = scmp.eq.s32.totalorder %s14, 3
    %p32 = por %p30, %p31
    %p33 = scmp.ne.s32.totalorder %s22, %s23
    %p34 = scmp.eq.s32.totalorder %s14, 0
    %p35 = por %p33, %p34
    %p36 = scmp.ne.s32.totalorder %s22, %s23
    %p37 = scmp.eq.s32.totalorder %s15, 3
    %p38 = por %p36, %p37
    %p40 = scmp.ne.s32.totalorder %s23, %s39
    %p41 = scmp.eq.s32.totalorder %s15, 0
    %p42 = por %p40, %p41
    %s43 = ssub.s32 %s9, %s16
    %p44 = scmp.eq.s32.totalorder %s43, 0
    %s46 = sadd.s32 %s45, 1
    %s47 = scalar_select %p44, %s45, %s46
    %p50 = pneg %p44
    %p51 = scmp.eq.s32.totalorder %s9, 3
    %p52 = por %p50, %p51
    %p53 = scmp.ne.s32.totalorder %s45, %s48
    %p54 = scmp.eq.s32.totalorder %s9, 0
    %p55 = por %p53, %p54
    %p56 = scmp.ne.s32.totalorder %s45, %s48
    %p57 = scmp.eq.s32.totalorder %s14, 3
    %p58 = por %p56, %p57
    %p59 = scmp.ne.s32.totalorder %s48, %s49
    %p60 = scmp.eq.s32.totalorder %s14, 0
    %p61 = por %p59, %p60
    %p62 = scmp.ne.s32.totalorder %s48, %s49
    %p63 = scmp.eq.s32.totalorder %s15, 3
    %p64 = por %p62, %p63
    %p66 = scmp.ne.s32.totalorder %s49, %s65
    %p67 = scmp.eq.s32.totalorder %s15, 0
    %p68 = por %p66, %p67
    %s69 = ssub.s32 %s9, %s16
    %p70 = scmp.eq.s32.totalorder %s69, 0
    %s72 = sadd.s32 %s71, 1
    %s73 = scalar_select %p70, %s71, %s72
    %p76 = pneg %p70
    %p77 = scmp.eq.s32.totalorder %s9, 3
    %p78 = por %p76, %p77
    %p79 = scmp.ne.s32.totalorder %s71, %s74
    %p80 = scmp.eq.s32.totalorder %s9, 0
    %p81 = por %p79, %p80
    %p82 = scmp.ne.s32.totalorder %s71, %s74
    %p83 = scmp.eq.s32.totalorder %s14, 3
    %p84 = por %p82, %p83
    %p85 = scmp.ne.s32.totalorder %s74, %s75
    %p86 = scmp.eq.s32.totalorder %s14, 0
    %p87 = por %p85, %p86
    %p88 = scmp.ne.s32.totalorder %s74, %s75
    %p89 = scmp.eq.s32.totalorder %s15, 3
    %p90 = por %p88, %p89
    %p92 = scmp.ne.s32.totalorder %s75, %s91
    %p93 = scmp.eq.s32.totalorder %s15, 0
    %p94 = por %p92, %p93
    %s95 = ssub.s32 %s9, %s16
    %p96 = scmp.eq.s32.totalorder %s95, 0
    %s98 = sadd.s32 %s97, 1
    %s99 = scalar_select %p96, %s97, %s98
    %p102 = pneg %p96
    %p103 = scmp.eq.s32.totalorder %s9, 3
    %p104 = por %p102, %p103
    %p105 = scmp.ne.s32.totalorder %s97, %s100
    %p106 = scmp.eq.s32.totalorder %s9, 0
    %p107 = por %p105, %p106
    %p108 = scmp.ne.s32.totalorder %s97, %s100
    %p109 = scmp.eq.s32.totalorder %s14, 3
    %p110 = por %p108, %p109
    %p111 = scmp.ne.s32.totalorder %s100, %s101
    %p112 = scmp.eq.s32.totalorder %s14, 0
    %p113 = por %p111, %p112
    %p114 = scmp.ne.s32.totalorder %s100, %s101
    %p115 = scmp.eq.s32.totalorder %s15, 3
    %p116 = por %p114, %p115
    %p118 = scmp.ne.s32.totalorder %s101, %s117
    %p119 = scmp.eq.s32.totalorder %s15, 0
    %p120 = por %p118, %p119
    %p121 = scmp.le.s32.totalorder 1, %s9
    %p122 = scmp.lt.s32.totalorder %s9, 5
    %p123 = pnand %p121, %p122
    %p124 = pneg %p123
    // Predicated region
    $region9: #{visual_transformer_forward.22} parent=5 // pred_check
      _
    $region10: #{visual_transformer_forward.22} parent=5 // pred_check_branch
      %126 = sbr.rel (%p123) target = $region12
    $region11: #{visual_transformer_forward.22} parent=5 // pred_region
      %s127 = ssub.s32 %s9, 1
    $region12: #{visual_transformer_forward.22} parent=5 // pred_fallthru
      _
    %p128 = scmp.lt.s32.totalorder %s9, 4
    // Predicated region
    $region13: #{visual_transformer_forward.22} parent=5 // pred_check
      %p129 = pneg %p128
    $region14: #{visual_transformer_forward.22} parent=5 // pred_check_branch
      %131 = sbr.rel (%p129) target = $region16
    $region15: #{visual_transformer_forward.22} parent=5 // pred_region
      // Predicated region
      $region17: #{visual_transformer_forward.22} parent=15 // pred_check
        %p132 = pneg %p29
      $region18: #{visual_transformer_forward.22} parent=15 // pred_check_branch
        %134 = sbr.rel (%p132) target = $region20
      $region19: #{visual_transformer_forward.22} parent=15 // pred_region
        %p135 = scmp.lt.s32.totalorder %s9, 3
        %s136 = scalar_select %p135, %s9, 3
        %s137 = smul.addr %s136, 3
        %s138 = smul.addr %s137, 8
        %s139 = scalar_lea.vmem %s0, %s138
      $region20: #{visual_transformer_forward.22} parent=15 // pred_fallthru
        _
      // Predicated region
      $region21: #{visual_transformer_forward.22} parent=15 // pred_check
        %p140 = pneg %p55
      $region22: #{visual_transformer_forward.22} parent=15 // pred_check_branch
        %142 = sbr.rel (%p140) target = $region24
      $region23: #{visual_transformer_forward.22} parent=15 // pred_region
        %p143 = scmp.lt.s32.totalorder %s9, 3
        %s144 = scalar_select %p143, %s9, 3
        %s145 = smul.addr %s144, 3
        %s146 = smul.addr %s145, 8
        %s147 = scalar_lea.vmem %s1, %s146
      $region24: #{visual_transformer_forward.22} parent=15 // pred_fallthru
        _
      // Predicated region
      $region25: #{visual_transformer_forward.22} parent=15 // pred_check
        %p148 = pneg %p81
      $region26: #{visual_transformer_forward.22} parent=15 // pred_check_branch
        %150 = sbr.rel (%p148) target = $region28
      $region27: #{visual_transformer_forward.22} parent=15 // pred_region
        %p151 = scmp.lt.s32.totalorder %s9, 3
        %s152 = scalar_select %p151, %s9, 3
        %s153 = smul.addr %s152, 3
        %s154 = smul.addr %s153, 8
        %s155 = scalar_lea.vmem %s2, %s154
      $region28: #{visual_transformer_forward.22} parent=15 // pred_fallthru
        _
    $region16: #{visual_transformer_forward.22} parent=5 // pred_fallthru
      _
    %p156 = scmp.le.s32.totalorder 1, %s9
    %p157 = scmp.lt.s32.totalorder %s9, 5
    %p158 = pnand %p156, %p157
    %p159 = pneg %p158
    // Predicated region
    $region29: #{visual_transformer_forward.22} parent=5 // pred_check
      _
    $region30: #{visual_transformer_forward.22} parent=5 // pred_check_branch
      %161 = sbr.rel (%p158) target = $region32
    $region31: #{visual_transformer_forward.22} parent=5 // pred_region
      %s162 = ssub.s32 %s9, 1
      %p163 = scmp.lt.s32.totalorder %s14, 3
      %s164 = scalar_select %p163, %s14, 3
      %s165 = smul.addr %s164, 3
      %s166 = smul.addr %s165, 8
      %s167 = scalar_lea.vmem %s0, %s166
      %p168 = pneg %p35
      %p169 = pneg %p32
      %p170 = scmp.lt.s32.totalorder %s14, 3
      %s171 = scalar_select %p170, %s14, 3
      %s172 = smul.addr %s171, 3
      %s173 = smul.addr %s172, 8
      %s174 = scalar_lea.vmem %s1, %s173
      %p175 = pneg %p61
      %p176 = pneg %p58
      %p177 = scmp.lt.s32.totalorder %s14, 3
      %s178 = scalar_select %p177, %s14, 3
      %s179 = smul.addr %s178, 3
      %s180 = smul.addr %s179, 8
      %s181 = scalar_lea.vmem %s2, %s180
      %p182 = pneg %p87
      %p183 = pneg %p84
      %p184 = pneg %p113
      %p185 = pneg %p110
      %p186 = scmp.lt.s32.totalorder %s14, 3
      %s187 = scalar_select %p186, %s14, 3
      %s188 = smul.addr %s187, 3
      %s189 = smul.addr %s188, 8
      %s190 = scalar_lea.vmem %s3, %s189
      %p191 = scmp.lt.s32.totalorder %s14, 3
      %s192 = scalar_select %p191, %s14, 3
      %s193 = smul.addr %s192, 3
      %s194 = smul.addr %s193, 8
      %s195 = scalar_lea.vmem %s0, %s194
      %p196 = scmp.lt.s32.totalorder %s14, 3
      %s197 = scalar_select %p196, %s14, 3
      %s198 = smul.addr %s197, 3
      %s199 = smul.addr %s198, 8
      %s200 = scalar_lea.vmem %s1, %s199
      %p201 = scmp.lt.s32.totalorder %s14, 3
      %s202 = scalar_select %p201, %s14, 3
      %s203 = smul.addr %s202, 3
      %s204 = smul.addr %s203, 8
      %s205 = scalar_lea.vmem %s2, %s204
      %p206 = scmp.lt.s32.totalorder %s14, 3
      %s207 = scalar_select %p206, %s14, 3
      %s208 = smul.addr %s207, 3
      %s209 = smul.addr %s208, 8
      %s210 = scalar_lea.vmem %s3, %s209
      %v211 = vld [vmem:[%s195] sm:$0xff]
      %v212 = vld [vmem:[%s195 + $0x8] sm:$0xff]
      %v213 = vld [vmem:[%s195 + $0x10] sm:$0x1]
      %v214 = vld [vmem:[%s200] sm:$0xff]
      %v215 = vld [vmem:[%s200 + $0x8] sm:$0xff]
      %v216 = vld [vmem:[%s200 + $0x10] sm:$0x1]
      %v217 = vld [vmem:[%s205] sm:$0xff]
      %v218 = vld [vmem:[%s205 + $0x8] sm:$0xff]
      %v219 = vld [vmem:[%s205 + $0x10] sm:$0x1]
      %vm220 = vcmask 130048
      %v222 = vsel %vm220, %v211, 0
      %v225 = vsel %vm220, %v212, 0
      %v228 = vsel %vm220, %v213, 0
      %v231 = vsel %vm220, %v214, 0
      %v234 = vsel %vm220, %v215, 0
      %v237 = vsel %vm220, %v216, 0
      %239 = vmatprep.subr.mxu0 0.0
      %240 = vmatpush1.xpose.msra.mxu0 %v231
      %241 = vmatprep.subr.mxu0 0.0
      %242 = vmatpush1.xpose.msra.mxu0 %v234
      %243 = vmatprep.subr.mxu0 0.0
      %244 = vmatpush1.xpose.msra.mxu0 %v237
      %245 = vmatprep.subr.mxu0 0.0
      %246 = vmatpush1.xpose.msra.mxu0 0.0
      %247 = vmatprep.subr.mxu0 0.0
      %248 = vmatpush1.xpose.msra.mxu0 0.0
      %249 = vmatprep.subr.mxu0 0.0
      %250 = vmatpush1.xpose.msra.mxu0 0.0
      %251 = vmatprep.subr.mxu0 0.0
      %252 = vmatpush1.xpose.msra.mxu0 0.0
      %253 = vmatprep.subr.mxu0 0.0
      %254 = vmatpush1.xpose.msra.mxu0 0.0
      %255 = vmatprep.subr.mxu0 0.0
      %256 = vmatpush1.xpose.msra.mxu0 0.0
      %257 = vmatprep.subr.mxu0 0.0
      %258 = vmatpush1.xpose.msra.mxu0 0.0
      %259 = vmatprep.subr.mxu0 0.0
      %260 = vmatpush1.xpose.msra.mxu0 0.0
      %261 = vmatprep.subr.mxu0 0.0
      %262 = vmatpush1.xpose.msra.mxu0 0.0
      %263 = vmatprep.subr.mxu0 0.0
      %264 = vmatpush1.xpose.msra.mxu0 0.0
      %265 = vmatprep.subr.mxu0 0.0
      %266 = vmatpush1.xpose.msra.mxu0 0.0
      %267 = vmatprep.subr.mxu0 0.0
      %268 = vmatpush1.xpose.msra.mxu0 0.0
      %269 = vmatprep.subr.mxu0 0.0
      %270 = vmatpush1.xpose.msra.mxu0 0.0
      %271 = vmatprep.subr.mxu0 0.0
      %272 = vmatpush1.xpose.msra.mxu0 0.0
      %273 = vmatprep.subr.mxu0 0.0
      %274 = vmatpush1.xpose.msra.mxu0 0.0
      %275 = vmatprep.subr.mxu0 0.0
      %276 = vmatpush1.xpose.msra.mxu0 0.0
      %277 = vmatprep.subr.mxu0 0.0
      %278 = vmatpush1.xpose.msra.mxu0 0.0
      %279 = vmatprep.subr.mxu0 0.0
      %280 = vmatpush1.xpose.msra.mxu0 0.0
      %281 = vmatprep.subr.mxu0 0.0
      %282 = vmatpush1.xpose.msra.mxu0 0.0
      %283 = vmatprep.subr.mxu0 0.0
      %284 = vmatpush1.xpose.msra.mxu0 0.0
      %285 = vmatprep.subr.mxu0 0.0
      %286 = vmatpush1.xpose.msra.mxu0 0.0
      %287 = vmatprep.subr.mxu0 0.0
      %288 = vmatpush1.xpose.msra.mxu0 0.0
      %289 = vmatprep.subr.mxu0 0.0
      %290 = vmatpush1.xpose.msra.mxu0 0.0
      %291 = vmatprep.subr.mxu0 0.0
      %292 = vmatpush1.xpose.msra.mxu0 0.0
      %293 = vmatprep.subr.mxu0 0.0
      %294 = vmatpush1.xpose.msra.mxu0 0.0
      %295 = vmatprep.subr.mxu0 0.0
      %296 = vmatpush1.xpose.msra.mxu0 0.0
      %297 = vmatprep.subr.mxu0 0.0
      %298 = vmatpush1.xpose.msra.mxu0 0.0
      %299 = vmatprep.subr.mxu0 0.0
      %300 = vmatpush1.xpose.msra.mxu0 0.0
      %301 = vmatprep.subr.mxu0 0.0
      %302 = vmatpush1.xpose.msra.mxu0 0.0
      %303 = vmatprep.mubr.f32.mxu0 0.0
      %304 = vmatmul.mubr.f32.gmra.mrb[0].mxu0 %v222
      %v305 = vpop.f32.mrb[0].mxu0
      %v306 = vadd.f32 0.0, %v305
      %v307 = vpop.f32.mrb[0].mxu0
      %308 = vmatprep.mubr.f32.mxu0 0.0
      %309 = vmatmul.mubr.f32.gmra.mrb[0].mxu0 %v225
      %v310 = vpop.f32.mrb[0].mxu0
      %v311 = vadd.f32 0.0, %v310
      %v312 = vpop.f32.mrb[0].mxu0
      %313 = vmatprep.mubr.f32.mxu0 0.0
      %314 = vmatmul.mubr.f32.gmra.mrb[0].mxu0 %v228
      %v315 = vpop.f32.mrb[0].mxu0
      %v316 = vadd.f32 0.0, %v315
      %v317 = vpop.f32.mrb[0].mxu0
      %318 = vdwg.mxu0
      %v319 = vmul.f32 %v306, 0.25
      %v320 = vmul.f32 %v311, 0.25
      %v321 = vmul.f32 %v316, 0.25
      %vm322 = vcmask 138240
      %v323 = vsel %vm322, %v319, -inf
      %324 = vmax.xlane.f32.xlu0 %v323
      %v325 = vpop.xlane.xlu0 %324
      %v326 = vsel %vm322, %v320, -inf
      %327 = vmax.xlane.f32.xlu0 %v326
      %v328 = vpop.xlane.xlu0 %327
      %vm329 = vcmask 131072
      %v330 = vsel %vm329, %v321, -inf
      %331 = vmax.xlane.f32.xlu0 %v330
      %v332 = vpop.xlane.xlu0 %331
      %v333 = vsub.f32 %v319, %v325
      %v334 = vsub.f32 %v320, %v328
      %v335 = vsub.f32 %v321, %v332
      %v336 = vmul.f32 %v333, 1.442695
      %v337 = vpow.pop %v336
      %v338 = vmul.f32 %v334, 1.442695
      %v339 = vpow.pop %v338
      %v340 = vmul.f32 %v335, 1.442695
      %v341 = vpow.pop %v340
      %v342 = vsel %vm322, %v337, 0.0
      %343 = vadd.xlane.f32.xlu0 %v342
      %v344 = vpop.xlane.xlu0 %343
      %v345 = vsel %vm322, %v339, 0.0
      %346 = vadd.xlane.f32.xlu0 %v345
      %v347 = vpop.xlane.xlu0 %346
      %v348 = vsel %vm329, %v341, 0.0
      %349 = vadd.xlane.f32.xlu0 %v348
      %v350 = vpop.xlane.xlu0 %349
      %v351 = vrcp.pop %v344
      %v352 = vmul.f32 %v337, %v351
      %v353 = vrcp.pop %v347
      %v354 = vmul.f32 %v339, %v353
      %v355 = vrcp.pop %v350
      %v356 = vmul.f32 %v341, %v355
      %v358 = vsel %vm322, %v352, 0
      %v361 = vsel %vm322, %v354, 0
      %v364 = vsel %vm322, %v356, 0
      %vm366 = vcmask 1040384
      %v368 = vsel %vm366, %v219, 0
      %370 = vmatprep.subr.mxu0 0.0
      %371 = vmatpush1.msra.mxu0 %v217
      %372 = vmatprep.subr.mxu0 0.0
      %373 = vmatpush1.msra.mxu0 %v218
      %374 = vmatprep.subr.mxu0 0.0
      %375 = vmatpush1.msra.mxu0 %v368
      %376 = vmatprep.subr.mxu0 0.0
      %377 = vmatpush1.msra.mxu0 0.0
      %378 = vmatprep.subr.mxu0 0.0
      %379 = vmatpush1.msra.mxu0 0.0
      %380 = vmatprep.subr.mxu0 0.0
      %381 = vmatpush1.msra.mxu0 0.0
      %382 = vmatprep.subr.mxu0 0.0
      %383 = vmatpush1.msra.mxu0 0.0
      %384 = vmatprep.subr.mxu0 0.0
      %385 = vmatpush1.msra.mxu0 0.0
      %386 = vmatprep.subr.mxu0 0.0
      %387 = vmatpush1.msra.mxu0 0.0
      %388 = vmatprep.subr.mxu0 0.0
      %389 = vmatpush1.msra.mxu0 0.0
      %390 = vmatprep.subr.mxu0 0.0
      %391 = vmatpush1.msra.mxu0 0.0
      %392 = vmatprep.subr.mxu0 0.0
      %393 = vmatpush1.msra.mxu0 0.0
      %394 = vmatprep.subr.mxu0 0.0
      %395 = vmatpush1.msra.mxu0 0.0
      %396 = vmatprep.subr.mxu0 0.0
      %397 = vmatpush1.msra.mxu0 0.0
      %398 = vmatprep.subr.mxu0 0.0
      %399 = vmatpush1.msra.mxu0 0.0
      %400 = vmatprep.subr.mxu0 0.0
      %401 = vmatpush1.msra.mxu0 0.0
      %402 = vmatprep.subr.mxu0 0.0
      %403 = vmatpush1.msra.mxu0 0.0
      %404 = vmatprep.subr.mxu0 0.0
      %405 = vmatpush1.msra.mxu0 0.0
      %406 = vmatprep.subr.mxu0 0.0
      %407 = vmatpush1.msra.mxu0 0.0
      %408 = vmatprep.subr.mxu0 0.0
      %409 = vmatpush1.msra.mxu0 0.0
      %410 = vmatprep.subr.mxu0 0.0
      %411 = vmatpush1.msra.mxu0 0.0
      %412 = vmatprep.subr.mxu0 0.0
      %413 = vmatpush1.msra.mxu0 0.0
      %414 = vmatprep.subr.mxu0 0.0
      %415 = vmatpush1.msra.mxu0 0.0
      %416 = vmatprep.subr.mxu0 0.0
      %417 = vmatpush1.msra.mxu0 0.0
      %418 = vmatprep.subr.mxu0 0.0
      %419 = vmatpush1.msra.mxu0 0.0
      %420 = vmatprep.subr.mxu0 0.0
      %421 = vmatpush1.msra.mxu0 0.0
      %422 = vmatprep.subr.mxu0 0.0
      %423 = vmatpush1.msra.mxu0 0.0
      %424 = vmatprep.subr.mxu0 0.0
      %425 = vmatpush1.msra.mxu0 0.0
      %426 = vmatprep.subr.mxu0 0.0
      %427 = vmatpush1.msra.mxu0 0.0
      %428 = vmatprep.subr.mxu0 0.0
      %429 = vmatpush1.msra.mxu0 0.0
      %430 = vmatprep.subr.mxu0 0.0
      %431 = vmatpush1.msra.mxu0 0.0
      %432 = vmatprep.subr.mxu0 0.0
      %433 = vmatpush1.msra.mxu0 0.0
      %434 = vmatprep.mubr.f32.mxu0 0.0
      %435 = vmatmul.mubr.f32.gmra.mrb[0].mxu0 %v358
      %v436 = vpop.f32.mrb[0].mxu0
      %v437 = vadd.f32 0.0, %v436
      %v438 = vpop.f32.mrb[0].mxu0
      %439 = vmatprep.mubr.f32.mxu0 0.0
      %440 = vmatmul.mubr.f32.gmra.mrb[0].mxu0 %v361
      %v441 = vpop.f32.mrb[0].mxu0
      %v442 = vadd.f32 0.0, %v441
      %v443 = vpop.f32.mrb[0].mxu0
      %444 = vmatprep.mubr.f32.mxu0 0.0
      %445 = vmatmul.mubr.f32.gmra.mrb[0].mxu0 %v364
      %v446 = vpop.f32.mrb[0].mxu0
      %v447 = vadd.f32 0.0, %v446
      %v448 = vpop.f32.mrb[0].mxu0
      %449 = vdwg.mxu0
      %450 = vst.msk [vmem:[%s210] sm:$0xff] %vm220, %v437
      %451 = vst.msk [vmem:[%s210 + $0x8] sm:$0xff] %vm220, %v442
      %vm452 = vcmask 122880
      %453 = vst.msk [vmem:[%s210 + $0x10] sm:$0x1] %vm452, %v447
      %p454 = scmp.lt.s32.totalorder %s14, 3
      %s455 = scalar_select %p454, %s14, 3
      %s456 = smul.addr %s455, 3
      %s457 = smul.addr %s456, 8
      %s458 = scalar_lea.vmem %s3, %s457
      // Predicated region
      $region33: #{visual_transformer_forward.22} parent=31 // pred_check
        %p459 = pneg %p110
      $region34: #{visual_transformer_forward.22} parent=31 // pred_check_branch
        %461 = sbr.rel (%p459) target = $region36
      $region35: #{visual_transformer_forward.22} parent=31 // pred_region
        _
      $region36: #{visual_transformer_forward.22} parent=31 // pred_fallthru
        _
    $region32: #{visual_transformer_forward.22} parent=5 // pred_fallthru
      _
    %p462 = scmp.le.s32.totalorder 2, %s9
    // Predicated region
    $region37: #{visual_transformer_forward.22} parent=5 // pred_check
      %p463 = pneg %p462
    $region38: #{visual_transformer_forward.22} parent=5 // pred_check_branch
      %465 = sbr.rel (%p463) target = $region40
    $region39: #{visual_transformer_forward.22} parent=5 // pred_region
      %s466 = ssub.s32 %s9, 2
      // Predicated region
      $region41: #{visual_transformer_forward.22} parent=39 // pred_check
        %p467 = pneg %p116
      $region42: #{visual_transformer_forward.22} parent=39 // pred_check_branch
        %469 = sbr.rel (%p467) target = $region44
      $region43: #{visual_transformer_forward.22} parent=39 // pred_region
        %p470 = scmp.lt.s32.totalorder %s15, 3
        %s471 = scalar_select %p470, %s15, 3
        %s472 = smul.addr %s471, 3
        %s473 = smul.addr %s472, 8
        %s474 = scalar_lea.vmem %s3, %s473
      $region44: #{visual_transformer_forward.22} parent=39 // pred_fallthru
        _
    $region40: #{visual_transformer_forward.22} parent=5 // pred_fallthru
      _
  $region6: #{visual_transformer_forward.22} parent=0 // loop_footer
    %s13 = sadd.s32 1, %s9
  $region7: #{visual_transformer_forward.22} parent=0 // loop_footer_branch
    %8 = sbr.rel target = $region3
  $region8: #{visual_transformer_forward.22} parent=0 // loop_exit
    _

// kernel: visual_transformer_forward.25
$region0: #{visual_transformer_forward.25}
  #allocation0 [shape = 'u32[]', space=smem, size = 0x4, offset = 0x4, fixed_abs, tag = 'smem constant byte address 0x4 - core index']
  #allocation1 [shape = 'u32[144,128]{1,0:T(1,128)}', space=vmem, size = 0x12000, scoped, tag = 'internal scratch']
  %s0 = inlined_call_operand.vmem [shape: f32[34,32], index: 0, kind: input, shape index: {}]
  %s1 = inlined_call_operand.vmem [shape: f32[32,128], index: 1, kind: input, shape index: {}]
  %s2 = inlined_call_operand.vmem [shape: f32[1,128], index: 2, kind: input, shape index: {}]
  %s3 = inlined_call_operand.vmem [shape: f32[34,128], index: 3, kind: output, shape index: {}]
  %s4 = sld [smem:[#allocation0]]
  $region22: #{visual_transformer_forward.25} parent=0
    _
  %s6 = ssub.s32 1, %s4
  %s7 = scalar_select 0, %s6, %s4
  // Predicated region
  $region2: #{visual_transformer_forward.25} parent=0 // pred_check
    _
  $region3: #{visual_transformer_forward.25} parent=0 // pred_check_branch
    %9 = sbr.rel (0) target = $region5
  $region4: #{visual_transformer_forward.25} parent=0 // pred_region
    _
  $region5: #{visual_transformer_forward.25} parent=0 // pred_fallthru
    _
  // Predicated region
  $region6: #{visual_transformer_forward.25} parent=0 // pred_check
    _
  $region7: #{visual_transformer_forward.25} parent=0 // pred_check_branch
    %11 = sbr.rel (0) target = $region9
  $region8: #{visual_transformer_forward.25} parent=0 // pred_region
    _
  $region9: #{visual_transformer_forward.25} parent=0 // pred_fallthru
    _
  // Predicated region
  $region10: #{visual_transformer_forward.25} parent=0 // pred_check
    _
  $region11: #{visual_transformer_forward.25} parent=0 // pred_check_branch
    %13 = sbr.rel (0) target = $region13
  $region12: #{visual_transformer_forward.25} parent=0 // pred_region
    _
  $region13: #{visual_transformer_forward.25} parent=0 // pred_fallthru
    _
  %v14 = vld [vmem:[%s0] sm:$0xff]
  %v15 = vld [vmem:[%s0 + $0x8] sm:$0xff]
  %v16 = vld [vmem:[%s0 + $0x10] sm:$0xff]
  %v17 = vld [vmem:[%s0 + $0x18] sm:$0xff]
  %v18 = vld [vmem:[%s0 + $0x20] sm:$0x3]
  %v19 = vld [vmem:[%s1] sm:$0xff]
  %v20 = vld [vmem:[%s1 + $0x8] sm:$0xff]
  %v21 = vld [vmem:[%s1 + $0x10] sm:$0xff]
  %v22 = vld [vmem:[%s1 + $0x18] sm:$0xff]
  %v23 = vld [vmem:[%s2] sm:$0x1]
  %v25 = vlaneseq
  %v26 = vshrl.u32 %v25, 7
  %v27 = vsub.s32 0, %v26
  %v28 = vrot.slane %v23, %v27
  %vm30 = vcmask 261120
  %v32 = vsel %vm30, %v14, 0
  %v35 = vsel %vm30, %v15, 0
  %v38 = vsel %vm30, %v16, 0
  %v41 = vsel %vm30, %v17, 0
  %v44 = vsel %vm30, %v18, 0
  %46 = vmatprep.subr.mxu0 0.0
  %47 = vmatpush1.msra.mxu0 %v19
  %48 = vmatprep.subr.mxu0 0.0
  %49 = vmatpush1.msra.mxu0 %v20
  %50 = vmatprep.subr.mxu0 0.0
  %51 = vmatpush1.msra.mxu0 %v21
  %52 = vmatprep.subr.mxu0 0.0
  %53 = vmatpush1.msra.mxu0 %v22
  %54 = vmatprep.subr.mxu0 0.0
  %55 = vmatpush1.msra.mxu0 0.0
  %56 = vmatprep.subr.mxu0 0.0
  %57 = vmatpush1.msra.mxu0 0.0
  %58 = vmatprep.subr.mxu0 0.0
  %59 = vmatpush1.msra.mxu0 0.0
  %60 = vmatprep.subr.mxu0 0.0
  %61 = vmatpush1.msra.mxu0 0.0
  %62 = vmatprep.subr.mxu0 0.0
  %63 = vmatpush1.msra.mxu0 0.0
  %64 = vmatprep.subr.mxu0 0.0
  %65 = vmatpush1.msra.mxu0 0.0
  %66 = vmatprep.subr.mxu0 0.0
  %67 = vmatpush1.msra.mxu0 0.0
  %68 = vmatprep.subr.mxu0 0.0
  %69 = vmatpush1.msra.mxu0 0.0
  %70 = vmatprep.subr.mxu0 0.0
  %71 = vmatpush1.msra.mxu0 0.0
  %72 = vmatprep.subr.mxu0 0.0
  %73 = vmatpush1.msra.mxu0 0.0
  %74 = vmatprep.subr.mxu0 0.0
  %75 = vmatpush1.msra.mxu0 0.0
  %76 = vmatprep.subr.mxu0 0.0
  %77 = vmatpush1.msra.mxu0 0.0
  %78 = vmatprep.subr.mxu0 0.0
  %79 = vmatpush1.msra.mxu0 0.0
  %80 = vmatprep.subr.mxu0 0.0
  %81 = vmatpush1.msra.mxu0 0.0
  %82 = vmatprep.subr.mxu0 0.0
  %83 = vmatpush1.msra.mxu0 0.0
  %84 = vmatprep.subr.mxu0 0.0
  %85 = vmatpush1.msra.mxu0 0.0
  %86 = vmatprep.subr.mxu0 0.0
  %87 = vmatpush1.msra.mxu0 0.0
  %88 = vmatprep.subr.mxu0 0.0
  %89 = vmatpush1.msra.mxu0 0.0
  %90 = vmatprep.subr.mxu0 0.0
  %91 = vmatpush1.msra.mxu0 0.0
  %92 = vmatprep.subr.mxu0 0.0
  %93 = vmatpush1.msra.mxu0 0.0
  %94 = vmatprep.subr.mxu0 0.0
  %95 = vmatpush1.msra.mxu0 0.0
  %96 = vmatprep.subr.mxu0 0.0
  %97 = vmatpush1.msra.mxu0 0.0
  %98 = vmatprep.subr.mxu0 0.0
  %99 = vmatpush1.msra.mxu0 0.0
  %100 = vmatprep.subr.mxu0 0.0
  %101 = vmatpush1.msra.mxu0 0.0
  %102 = vmatprep.subr.mxu0 0.0
  %103 = vmatpush1.msra.mxu0 0.0
  %104 = vmatprep.subr.mxu0 0.0
  %105 = vmatpush1.msra.mxu0 0.0
  %106 = vmatprep.subr.mxu0 0.0
  %107 = vmatpush1.msra.mxu0 0.0
  %108 = vmatprep.subr.mxu0 0.0
  %109 = vmatpush1.msra.mxu0 0.0
  %110 = vmatprep.mubr.f32.mxu0 0.0
  %111 = vmatmul.mubr.f32.gmra.mrb[0].mxu0 %v32
  %v112 = vpop.f32.mrb[0].mxu0
  %v113 = vadd.f32 %v28, %v112
  %v114 = vpop.f32.mrb[0].mxu0
  %115 = vmatprep.mubr.f32.mxu0 0.0
  %116 = vmatmul.mubr.f32.gmra.mrb[0].mxu0 %v35
  %v117 = vpop.f32.mrb[0].mxu0
  %v118 = vadd.f32 %v28, %v117
  %v119 = vpop.f32.mrb[0].mxu0
  %120 = vmatprep.mubr.f32.mxu0 0.0
  %121 = vmatmul.mubr.f32.gmra.mrb[0].mxu0 %v38
  %v122 = vpop.f32.mrb[0].mxu0
  %v123 = vadd.f32 %v28, %v122
  %v124 = vpop.f32.mrb[0].mxu0
  %125 = vmatprep.mubr.f32.mxu0 0.0
  %126 = vmatmul.mubr.f32.gmra.mrb[0].mxu0 %v41
  %v127 = vpop.f32.mrb[0].mxu0
  %v128 = vadd.f32 %v28, %v127
  %v129 = vpop.f32.mrb[0].mxu0
  %130 = vmatprep.mubr.f32.mxu0 0.0
  %131 = vmatmul.mubr.f32.gmra.mrb[0].mxu0 %v44
  %v132 = vpop.f32.mrb[0].mxu0
  %v133 = vadd.f32 %v28, %v132
  %v134 = vpop.f32.mrb[0].mxu0
  %135 = vdwg.mxu0
  %v136 = vmul.f32 %v113, %v113
  %v137 = vmul.f32 %v118, %v118
  %v138 = vmul.f32 %v123, %v123
  %v139 = vmul.f32 %v128, %v128
  %v140 = vmul.f32 %v133, %v133
  %v141 = vmul.f32 %v113, %v136
  %v142 = vmul.f32 %v118, %v137
  %v143 = vmul.f32 %v123, %v138
  %v144 = vmul.f32 %v128, %v139
  %v145 = vmul.f32 %v133, %v140
  %v146 = vmul.f32 %v141, 0.044715
  %v147 = vmul.f32 %v142, 0.044715
  %v148 = vmul.f32 %v143, 0.044715
  %v149 = vmul.f32 %v144, 0.044715
  %v150 = vmul.f32 %v145, 0.044715
  %v151 = vadd.f32 %v113, %v146
  %v152 = vadd.f32 %v118, %v147
  %v153 = vadd.f32 %v123, %v148
  %v154 = vadd.f32 %v128, %v149
  %v155 = vadd.f32 %v133, %v150
  %v156 = vmul.f32 %v151, 0.7978846
  %v157 = vmul.f32 %v152, 0.7978846
  %v158 = vmul.f32 %v153, 0.7978846
  %v159 = vmul.f32 %v154, 0.7978846
  %v160 = vmul.f32 %v155, 0.7978846
  %v161 = vtanh.pop %v156
  %v162 = vtanh.pop %v157
  %v163 = vtanh.pop %v158
  %v164 = vtanh.pop %v159
  %v165 = vtanh.pop %v160
  %v166 = vadd.f32 %v161, 1.0
  %v167 = vadd.f32 %v162, 1.0
  %v168 = vadd.f32 %v163, 1.0
  %v169 = vadd.f32 %v164, 1.0
  %v170 = vadd.f32 %v165, 1.0
  %v171 = vmul.f32 %v166, 0.5
  %v172 = vmul.f32 %v167, 0.5
  %v173 = vmul.f32 %v168, 0.5
  %v174 = vmul.f32 %v169, 0.5
  %v175 = vmul.f32 %v170, 0.5
  %v176 = vmul.f32 %v113, %v171
  %v177 = vmul.f32 %v118, %v172
  %v178 = vmul.f32 %v123, %v173
  %v179 = vmul.f32 %v128, %v174
  %v180 = vmul.f32 %v133, %v175
  %181 = vst [vmem:[%s3] sm:$0xff] %v176
  %182 = vst [vmem:[%s3 + $0x8] sm:$0xff] %v177
  %183 = vst [vmem:[%s3 + $0x10] sm:$0xff] %v178
  %184 = vst [vmem:[%s3 + $0x18] sm:$0xff] %v179
  %185 = vst [vmem:[%s3 + $0x20] sm:$0x3] %v180
  // Predicated region
  $region14: #{visual_transformer_forward.25} parent=0 // pred_check
    _
  $region15: #{visual_transformer_forward.25} parent=0 // pred_check_branch
    %187 = sbr.rel (0) target = $region17
  $region16: #{visual_transformer_forward.25} parent=0 // pred_region
    _
  $region17: #{visual_transformer_forward.25} parent=0 // pred_fallthru
    _
  // Predicated region
  $region18: #{visual_transformer_forward.25} parent=0 // pred_check
    _
  $region19: #{visual_transformer_forward.25} parent=0 // pred_check_branch
    %189 = sbr.rel (0) target = $region21
  $region20: #{visual_transformer_forward.25} parent=0 // pred_region
    _
  $region21: #{visual_transformer_forward.25} parent=0 // pred_fallthru
    _

// kernel: visual_transformer_forward.23
$region0: #{visual_transformer_forward.23}
  #allocation0 [shape = 'u32[]', space=smem, size = 0x4, offset = 0x4, fixed_abs, tag = 'smem constant byte address 0x4 - core index']
  #allocation1 [shape = 'u32[144,128]{1,0:T(1,128)}', space=vmem, size = 0x12000, scoped, tag = 'internal scratch']
  %s0 = inlined_call_operand.vmem [shape: f32[34,32], index: 0, kind: input, shape index: {}]
  %s1 = inlined_call_operand.vmem [shape: f32[32,32], index: 1, kind: input, shape index: {}]
  %s2 = inlined_call_operand.vmem [shape: f32[1,32], index: 2, kind: input, shape index: {}]
  %s3 = inlined_call_operand.vmem [shape: f32[34,32], index: 3, kind: input, shape index: {}]
  %s4 = inlined_call_operand.vmem [shape: f32[34,32], index: 4, kind: output, shape index: {}]
  %s5 = sld [smem:[#allocation0]]
  $region26: #{visual_transformer_forward.23} parent=0
    _
  %s7 = ssub.s32 1, %s5
  %s8 = scalar_select 0, %s7, %s5
  // Predicated region
  $region2: #{visual_transformer_forward.23} parent=0 // pred_check
    _
  $region3: #{visual_transformer_forward.23} parent=0 // pred_check_branch
    %10 = sbr.rel (0) target = $region5
  $region4: #{visual_transformer_forward.23} parent=0 // pred_region
    _
  $region5: #{visual_transformer_forward.23} parent=0 // pred_fallthru
    _
  // Predicated region
  $region6: #{visual_transformer_forward.23} parent=0 // pred_check
    _
  $region7: #{visual_transformer_forward.23} parent=0 // pred_check_branch
    %12 = sbr.rel (0) target = $region9
  $region8: #{visual_transformer_forward.23} parent=0 // pred_region
    _
  $region9: #{visual_transformer_forward.23} parent=0 // pred_fallthru
    _
  // Predicated region
  $region10: #{visual_transformer_forward.23} parent=0 // pred_check
    _
  $region11: #{visual_transformer_forward.23} parent=0 // pred_check_branch
    %14 = sbr.rel (0) target = $region13
  $region12: #{visual_transformer_forward.23} parent=0 // pred_region
    _
  $region13: #{visual_transformer_forward.23} parent=0 // pred_fallthru
    _
  // Predicated region
  $region14: #{visual_transformer_forward.23} parent=0 // pred_check
    _
  $region15: #{visual_transformer_forward.23} parent=0 // pred_check_branch
    %16 = sbr.rel (0) target = $region17
  $region16: #{visual_transformer_forward.23} parent=0 // pred_region
    _
  $region17: #{visual_transformer_forward.23} parent=0 // pred_fallthru
    _
  %v17 = vld [vmem:[%s0] sm:$0xff]
  %v18 = vld [vmem:[%s0 + $0x8] sm:$0xff]
  %v19 = vld [vmem:[%s0 + $0x10] sm:$0xff]
  %v20 = vld [vmem:[%s0 + $0x18] sm:$0xff]
  %v21 = vld [vmem:[%s0 + $0x20] sm:$0x3]
  %v22 = vld [vmem:[%s1] sm:$0xff]
  %v23 = vld [vmem:[%s1 + $0x8] sm:$0xff]
  %v24 = vld [vmem:[%s1 + $0x10] sm:$0xff]
  %v25 = vld [vmem:[%s1 + $0x18] sm:$0xff]
  %v26 = vld [vmem:[%s2] sm:$0x1]
  %v28 = vlaneseq
  %v29 = vshrl.u32 %v28, 7
  %v30 = vsub.s32 0, %v29
  %v31 = vrot.slane %v26, %v30
  %vm33 = vcmask 261120
  %v35 = vsel %vm33, %v17, 0
  %v38 = vsel %vm33, %v18, 0
  %v41 = vsel %vm33, %v19, 0
  %v44 = vsel %vm33, %v20, 0
  %v47 = vsel %vm33, %v21, 0
  %49 = vmatprep.subr.mxu0 0.0
  %50 = vmatpush1.msra.mxu0 %v22
  %51 = vmatprep.subr.mxu0 0.0
  %52 = vmatpush1.msra.mxu0 %v23
  %53 = vmatprep.subr.mxu0 0.0
  %54 = vmatpush1.msra.mxu0 %v24
  %55 = vmatprep.subr.mxu0 0.0
  %56 = vmatpush1.msra.mxu0 %v25
  %57 = vmatprep.subr.mxu0 0.0
  %58 = vmatpush1.msra.mxu0 0.0
  %59 = vmatprep.subr.mxu0 0.0
  %60 = vmatpush1.msra.mxu0 0.0
  %61 = vmatprep.subr.mxu0 0.0
  %62 = vmatpush1.msra.mxu0 0.0
  %63 = vmatprep.subr.mxu0 0.0
  %64 = vmatpush1.msra.mxu0 0.0
  %65 = vmatprep.subr.mxu0 0.0
  %66 = vmatpush1.msra.mxu0 0.0
  %67 = vmatprep.subr.mxu0 0.0
  %68 = vmatpush1.msra.mxu0 0.0
  %69 = vmatprep.subr.mxu0 0.0
  %70 = vmatpush1.msra.mxu0 0.0
  %71 = vmatprep.subr.mxu0 0.0
  %72 = vmatpush1.msra.mxu0 0.0
  %73 = vmatprep.subr.mxu0 0.0
  %74 = vmatpush1.msra.mxu0 0.0
  %75 = vmatprep.subr.mxu0 0.0
  %76 = vmatpush1.msra.mxu0 0.0
  %77 = vmatprep.subr.mxu0 0.0
  %78 = vmatpush1.msra.mxu0 0.0
  %79 = vmatprep.subr.mxu0 0.0
  %80 = vmatpush1.msra.mxu0 0.0
  %81 = vmatprep.subr.mxu0 0.0
  %82 = vmatpush1.msra.mxu0 0.0
  %83 = vmatprep.subr.mxu0 0.0
  %84 = vmatpush1.msra.mxu0 0.0
  %85 = vmatprep.subr.mxu0 0.0
  %86 = vmatpush1.msra.mxu0 0.0
  %87 = vmatprep.subr.mxu0 0.0
  %88 = vmatpush1.msra.mxu0 0.0
  %89 = vmatprep.subr.mxu0 0.0
  %90 = vmatpush1.msra.mxu0 0.0
  %91 = vmatprep.subr.mxu0 0.0
  %92 = vmatpush1.msra.mxu0 0.0
  %93 = vmatprep.subr.mxu0 0.0
  %94 = vmatpush1.msra.mxu0 0.0
  %95 = vmatprep.subr.mxu0 0.0
  %96 = vmatpush1.msra.mxu0 0.0
  %97 = vmatprep.subr.mxu0 0.0
  %98 = vmatpush1.msra.mxu0 0.0
  %99 = vmatprep.subr.mxu0 0.0
  %100 = vmatpush1.msra.mxu0 0.0
  %101 = vmatprep.subr.mxu0 0.0
  %102 = vmatpush1.msra.mxu0 0.0
  %103 = vmatprep.subr.mxu0 0.0
  %104 = vmatpush1.msra.mxu0 0.0
  %105 = vmatprep.subr.mxu0 0.0
  %106 = vmatpush1.msra.mxu0 0.0
  %107 = vmatprep.subr.mxu0 0.0
  %108 = vmatpush1.msra.mxu0 0.0
  %109 = vmatprep.subr.mxu0 0.0
  %110 = vmatpush1.msra.mxu0 0.0
  %111 = vmatprep.subr.mxu0 0.0
  %112 = vmatpush1.msra.mxu0 0.0
  %113 = vmatprep.mubr.f32.mxu0 0.0
  %114 = vmatmul.mubr.f32.gmra.mrb[0].mxu0 %v35
  %v115 = vpop.f32.mrb[0].mxu0
  %v116 = vadd.f32 %v31, %v115
  %v117 = vpop.f32.mrb[0].mxu0
  %118 = vmatprep.mubr.f32.mxu0 0.0
  %119 = vmatmul.mubr.f32.gmra.mrb[0].mxu0 %v38
  %v120 = vpop.f32.mrb[0].mxu0
  %v121 = vadd.f32 %v31, %v120
  %v122 = vpop.f32.mrb[0].mxu0
  %123 = vmatprep.mubr.f32.mxu0 0.0
  %124 = vmatmul.mubr.f32.gmra.mrb[0].mxu0 %v41
  %v125 = vpop.f32.mrb[0].mxu0
  %v126 = vadd.f32 %v31, %v125
  %v127 = vpop.f32.mrb[0].mxu0
  %128 = vmatprep.mubr.f32.mxu0 0.0
  %129 = vmatmul.mubr.f32.gmra.mrb[0].mxu0 %v44
  %v130 = vpop.f32.mrb[0].mxu0
  %v131 = vadd.f32 %v31, %v130
  %v132 = vpop.f32.mrb[0].mxu0
  %133 = vmatprep.mubr.f32.mxu0 0.0
  %134 = vmatmul.mubr.f32.gmra.mrb[0].mxu0 %v47
  %v135 = vpop.f32.mrb[0].mxu0
  %v136 = vadd.f32 %v31, %v135
  %v137 = vpop.f32.mrb[0].mxu0
  %138 = vdwg.mxu0
  %v139 = vld [vmem:[%s3] sm:$0xff]
  %v140 = vld [vmem:[%s3 + $0x8] sm:$0xff]
  %v141 = vld [vmem:[%s3 + $0x10] sm:$0xff]
  %v142 = vld [vmem:[%s3 + $0x18] sm:$0xff]
  %v143 = vld [vmem:[%s3 + $0x20] sm:$0x3]
  %v144 = vadd.f32 %v139, %v116
  %v145 = vadd.f32 %v140, %v121
  %v146 = vadd.f32 %v141, %v126
  %v147 = vadd.f32 %v142, %v131
  %v148 = vadd.f32 %v143, %v136
  %149 = vst.msk [vmem:[%s4] sm:$0xff] %vm33, %v144
  %150 = vst.msk [vmem:[%s4 + $0x8] sm:$0xff] %vm33, %v145
  %151 = vst.msk [vmem:[%s4 + $0x10] sm:$0xff] %vm33, %v146
  %152 = vst.msk [vmem:[%s4 + $0x18] sm:$0xff] %vm33, %v147
  %vm153 = vcmask 254976
  %154 = vst.msk [vmem:[%s4 + $0x20] sm:$0x3] %vm153, %v148
  // Predicated region
  $region18: #{visual_transformer_forward.23} parent=0 // pred_check
    _
  $region19: #{visual_transformer_forward.23} parent=0 // pred_check_branch
    %156 = sbr.rel (0) target = $region21
  $region20: #{visual_transformer_forward.23} parent=0 // pred_region
    _
  $region21: #{visual_transformer_forward.23} parent=0 // pred_fallthru
    _
  // Predicated region
  $region22: #{visual_transformer_forward.23} parent=0 // pred_check
    _
  $region23: #{visual_transformer_forward.23} parent=0 // pred_check_branch
    %158 = sbr.rel (0) target = $region25
  $region24: #{visual_transformer_forward.23} parent=0 // pred_region
    _
  $region25: #{visual_transformer_forward.23} parent=0 // pred_fallthru
    _

// kernel: visual_transformer_forward.26
$region0: #{visual_transformer_forward.26}
  #allocation0 [shape = 'u32[]', space=smem, size = 0x4, offset = 0x4, fixed_abs, tag = 'smem constant byte address 0x4 - core index']
  #allocation1 [shape = 'u32[144,128]{1,0:T(1,128)}', space=vmem, size = 0x12000, scoped, tag = 'internal scratch']
  %s0 = inlined_call_operand.vmem [shape: f32[34,128], index: 0, kind: input, shape index: {}]
  %s1 = inlined_call_operand.vmem [shape: f32[128,32], index: 1, kind: input, shape index: {}]
  %s2 = inlined_call_operand.vmem [shape: f32[1,32], index: 2, kind: input, shape index: {}]
  %s3 = inlined_call_operand.vmem [shape: f32[34,32], index: 3, kind: input, shape index: {}]
  %s4 = inlined_call_operand.vmem [shape: f32[34,32], index: 4, kind: output, shape index: {}]
  %s5 = sld [smem:[#allocation0]]
  $region26: #{visual_transformer_forward.26} parent=0
    _
  %s7 = ssub.s32 1, %s5
  %s8 = scalar_select 0, %s7, %s5
  // Predicated region
  $region2: #{visual_transformer_forward.26} parent=0 // pred_check
    _
  $region3: #{visual_transformer_forward.26} parent=0 // pred_check_branch
    %10 = sbr.rel (0) target = $region5
  $region4: #{visual_transformer_forward.26} parent=0 // pred_region
    _
  $region5: #{visual_transformer_forward.26} parent=0 // pred_fallthru
    _
  // Predicated region
  $region6: #{visual_transformer_forward.26} parent=0 // pred_check
    _
  $region7: #{visual_transformer_forward.26} parent=0 // pred_check_branch
    %12 = sbr.rel (0) target = $region9
  $region8: #{visual_transformer_forward.26} parent=0 // pred_region
    _
  $region9: #{visual_transformer_forward.26} parent=0 // pred_fallthru
    _
  // Predicated region
  $region10: #{visual_transformer_forward.26} parent=0 // pred_check
    _
  $region11: #{visual_transformer_forward.26} parent=0 // pred_check_branch
    %14 = sbr.rel (0) target = $region13
  $region12: #{visual_transformer_forward.26} parent=0 // pred_region
    _
  $region13: #{visual_transformer_forward.26} parent=0 // pred_fallthru
    _
  // Predicated region
  $region14: #{visual_transformer_forward.26} parent=0 // pred_check
    _
  $region15: #{visual_transformer_forward.26} parent=0 // pred_check_branch
    %16 = sbr.rel (0) target = $region17
  $region16: #{visual_transformer_forward.26} parent=0 // pred_region
    _
  $region17: #{visual_transformer_forward.26} parent=0 // pred_fallthru
    _
  %v17 = vld [vmem:[%s0] sm:$0xff]
  %v18 = vld [vmem:[%s0 + $0x8] sm:$0xff]
  %v19 = vld [vmem:[%s0 + $0x10] sm:$0xff]
  %v20 = vld [vmem:[%s0 + $0x18] sm:$0xff]
  %v21 = vld [vmem:[%s0 + $0x20] sm:$0x3]
  %v22 = vld [vmem:[%s1] sm:$0xff]
  %v23 = vld [vmem:[%s1 + $0x8] sm:$0xff]
  %v24 = vld [vmem:[%s1 + $0x10] sm:$0xff]
  %v25 = vld [vmem:[%s1 + $0x18] sm:$0xff]
  %v26 = vld [vmem:[%s1 + $0x20] sm:$0xff]
  %v27 = vld [vmem:[%s1 + $0x28] sm:$0xff]
  %v28 = vld [vmem:[%s1 + $0x30] sm:$0xff]
  %v29 = vld [vmem:[%s1 + $0x38] sm:$0xff]
  %v30 = vld [vmem:[%s1 + $0x40] sm:$0xff]
  %v31 = vld [vmem:[%s1 + $0x48] sm:$0xff]
  %v32 = vld [vmem:[%s1 + $0x50] sm:$0xff]
  %v33 = vld [vmem:[%s1 + $0x58] sm:$0xff]
  %v34 = vld [vmem:[%s1 + $0x60] sm:$0xff]
  %v35 = vld [vmem:[%s1 + $0x68] sm:$0xff]
  %v36 = vld [vmem:[%s1 + $0x70] sm:$0xff]
  %v37 = vld [vmem:[%s1 + $0x78] sm:$0xff]
  %v38 = vld [vmem:[%s2] sm:$0x1]
  %v40 = vlaneseq
  %v41 = vshrl.u32 %v40, 7
  %v42 = vsub.s32 0, %v41
  %v43 = vrot.slane %v38, %v42
  %45 = vmatprep.subr.mxu0 0.0
  %46 = vmatpush1.msra.mxu0 %v22
  %47 = vmatprep.subr.mxu0 0.0
  %48 = vmatpush1.msra.mxu0 %v23
  %49 = vmatprep.subr.mxu0 0.0
  %50 = vmatpush1.msra.mxu0 %v24
  %51 = vmatprep.subr.mxu0 0.0
  %52 = vmatpush1.msra.mxu0 %v25
  %53 = vmatprep.subr.mxu0 0.0
  %54 = vmatpush1.msra.mxu0 %v26
  %55 = vmatprep.subr.mxu0 0.0
  %56 = vmatpush1.msra.mxu0 %v27
  %57 = vmatprep.subr.mxu0 0.0
  %58 = vmatpush1.msra.mxu0 %v28
  %59 = vmatprep.subr.mxu0 0.0
  %60 = vmatpush1.msra.mxu0 %v29
  %61 = vmatprep.subr.mxu0 0.0
  %62 = vmatpush1.msra.mxu0 %v30
  %63 = vmatprep.subr.mxu0 0.0
  %64 = vmatpush1.msra.mxu0 %v31
  %65 = vmatprep.subr.mxu0 0.0
  %66 = vmatpush1.msra.mxu0 %v32
  %67 = vmatprep.subr.mxu0 0.0
  %68 = vmatpush1.msra.mxu0 %v33
  %69 = vmatprep.subr.mxu0 0.0
  %70 = vmatpush1.msra.mxu0 %v34
  %71 = vmatprep.subr.mxu0 0.0
  %72 = vmatpush1.msra.mxu0 %v35
  %73 = vmatprep.subr.mxu0 0.0
  %74 = vmatpush1.msra.mxu0 %v36
  %75 = vmatprep.subr.mxu0 0.0
  %76 = vmatpush1.msra.mxu0 %v37
  %77 = vmatprep.subr.mxu0 0.0
  %78 = vmatpush1.msra.mxu0 0.0
  %79 = vmatprep.subr.mxu0 0.0
  %80 = vmatpush1.msra.mxu0 0.0
  %81 = vmatprep.subr.mxu0 0.0
  %82 = vmatpush1.msra.mxu0 0.0
  %83 = vmatprep.subr.mxu0 0.0
  %84 = vmatpush1.msra.mxu0 0.0
  %85 = vmatprep.subr.mxu0 0.0
  %86 = vmatpush1.msra.mxu0 0.0
  %87 = vmatprep.subr.mxu0 0.0
  %88 = vmatpush1.msra.mxu0 0.0
  %89 = vmatprep.subr.mxu0 0.0
  %90 = vmatpush1.msra.mxu0 0.0
  %91 = vmatprep.subr.mxu0 0.0
  %92 = vmatpush1.msra.mxu0 0.0
  %93 = vmatprep.subr.mxu0 0.0
  %94 = vmatpush1.msra.mxu0 0.0
  %95 = vmatprep.subr.mxu0 0.0
  %96 = vmatpush1.msra.mxu0 0.0
  %97 = vmatprep.subr.mxu0 0.0
  %98 = vmatpush1.msra.mxu0 0.0
  %99 = vmatprep.subr.mxu0 0.0
  %100 = vmatpush1.msra.mxu0 0.0
  %101 = vmatprep.subr.mxu0 0.0
  %102 = vmatpush1.msra.mxu0 0.0
  %103 = vmatprep.subr.mxu0 0.0
  %104 = vmatpush1.msra.mxu0 0.0
  %105 = vmatprep.subr.mxu0 0.0
  %106 = vmatpush1.msra.mxu0 0.0
  %107 = vmatprep.subr.mxu0 0.0
  %108 = vmatpush1.msra.mxu0 0.0
  %109 = vmatprep.mubr.f32.mxu0 0.0
  %110 = vmatmul.mubr.f32.gmra.mrb[0].mxu0 %v17
  %v111 = vpop.f32.mrb[0].mxu0
  %v112 = vadd.f32 %v43, %v111
  %v113 = vpop.f32.mrb[0].mxu0
  %114 = vmatprep.mubr.f32.mxu0 0.0
  %115 = vmatmul.mubr.f32.gmra.mrb[0].mxu0 %v18
  %v116 = vpop.f32.mrb[0].mxu0
  %v117 = vadd.f32 %v43, %v116
  %v118 = vpop.f32.mrb[0].mxu0
  %119 = vmatprep.mubr.f32.mxu0 0.0
  %120 = vmatmul.mubr.f32.gmra.mrb[0].mxu0 %v19
  %v121 = vpop.f32.mrb[0].mxu0
  %v122 = vadd.f32 %v43, %v121
  %v123 = vpop.f32.mrb[0].mxu0
  %124 = vmatprep.mubr.f32.mxu0 0.0
  %125 = vmatmul.mubr.f32.gmra.mrb[0].mxu0 %v20
  %v126 = vpop.f32.mrb[0].mxu0
  %v127 = vadd.f32 %v43, %v126
  %v128 = vpop.f32.mrb[0].mxu0
  %129 = vmatprep.mubr.f32.mxu0 0.0
  %130 = vmatmul.mubr.f32.gmra.mrb[0].mxu0 %v21
  %v131 = vpop.f32.mrb[0].mxu0
  %v132 = vadd.f32 %v43, %v131
  %v133 = vpop.f32.mrb[0].mxu0
  %134 = vdwg.mxu0
  %v135 = vld [vmem:[%s3] sm:$0xff]
  %v136 = vld [vmem:[%s3 + $0x8] sm:$0xff]
  %v137 = vld [vmem:[%s3 + $0x10] sm:$0xff]
  %v138 = vld [vmem:[%s3 + $0x18] sm:$0xff]
  %v139 = vld [vmem:[%s3 + $0x20] sm:$0x3]
  %v140 = vadd.f32 %v135, %v112
  %v141 = vadd.f32 %v136, %v117
  %v142 = vadd.f32 %v137, %v122
  %v143 = vadd.f32 %v138, %v127
  %v144 = vadd.f32 %v139, %v132
  %vm145 = vcmask 261120
  %146 = vst.msk [vmem:[%s4] sm:$0xff] %vm145, %v140
  %147 = vst.msk [vmem:[%s4 + $0x8] sm:$0xff] %vm145, %v141
  %148 = vst.msk [vmem:[%s4 + $0x10] sm:$0xff] %vm145, %v142
  %149 = vst.msk [vmem:[%s4 + $0x18] sm:$0xff] %vm145, %v143
  %vm150 = vcmask 254976
  %151 = vst.msk [vmem:[%s4 + $0x20] sm:$0x3] %vm150, %v144
  // Predicated region
  $region18: #{visual_transformer_forward.26} parent=0 // pred_check
    _
  $region19: #{visual_transformer_forward.26} parent=0 // pred_check_branch
    %153 = sbr.rel (0) target = $region21
  $region20: #{visual_transformer_forward.26} parent=0 // pred_region
    _
  $region21: #{visual_transformer_forward.26} parent=0 // pred_fallthru
    _
  // Predicated region
  $region22: #{visual_transformer_forward.26} parent=0 // pred_check
    _
  $region23: #{visual_transformer_forward.26} parent=0 // pred_check_branch
    %155 = sbr.rel (0) target = $region25
  $region24: #{visual_transformer_forward.26} parent=0 // pred_region
    _
  $region25: #{visual_transformer_forward.26} parent=0 // pred_fallthru
    _

// kernel: visual_transformer_forward.34
$region0: #{visual_transformer_forward.34}
  #allocation0 [shape = 'u32[]', space=smem, size = 0x4, offset = 0x4, fixed_abs, tag = 'smem constant byte address 0x4 - core index']
  #allocation1 [shape = 'u32[144,128]{1,0:T(1,128)}', space=vmem, size = 0x12000, scoped, tag = 'internal scratch']
  %s0 = inlined_call_operand.vmem [shape: f32[2,32], index: 0, kind: input, shape index: {}]
  %s1 = inlined_call_operand.vmem [shape: f32[1,32], index: 1, kind: input, shape index: {}]
  %s2 = inlined_call_operand.vmem [shape: f32[1,32], index: 2, kind: input, shape index: {}]
  %s3 = inlined_call_operand.vmem [shape: f32[2,32], index: 3, kind: output, shape index: {}]
  %s4 = sld [smem:[#allocation0]]
  $region22: #{visual_transformer_forward.34} parent=0
    _
  %s6 = ssub.s32 1, %s4
  %s7 = scalar_select 0, %s6, %s4
  // Predicated region
  $region2: #{visual_transformer_forward.34} parent=0 // pred_check
    _
  $region3: #{visual_transformer_forward.34} parent=0 // pred_check_branch
    %9 = sbr.rel (0) target = $region5
  $region4: #{visual_transformer_forward.34} parent=0 // pred_region
    _
  $region5: #{visual_transformer_forward.34} parent=0 // pred_fallthru
    _
  // Predicated region
  $region6: #{visual_transformer_forward.34} parent=0 // pred_check
    _
  $region7: #{visual_transformer_forward.34} parent=0 // pred_check_branch
    %11 = sbr.rel (0) target = $region9
  $region8: #{visual_transformer_forward.34} parent=0 // pred_region
    _
  $region9: #{visual_transformer_forward.34} parent=0 // pred_fallthru
    _
  // Predicated region
  $region10: #{visual_transformer_forward.34} parent=0 // pred_check
    _
  $region11: #{visual_transformer_forward.34} parent=0 // pred_check_branch
    %13 = sbr.rel (0) target = $region13
  $region12: #{visual_transformer_forward.34} parent=0 // pred_region
    _
  $region13: #{visual_transformer_forward.34} parent=0 // pred_fallthru
    _
  %v14 = vld [vmem:[%s0] sm:$0x3]
  %vm15 = vcmask 254976
  %v16 = vsel %vm15, %v14, 0.0
  %17 = vadd.xlane.f32.xlu0 %v16
  %v18 = vpop.xlane.xlu0 %17
  %v19 = vrcp.pop 32.0
  %v20 = vmul.f32 %v18, %v19
  %v21 = vsub.f32 %v14, %v20
  %v22 = vmul.f32 %v21, %v21
  %v23 = vsel %vm15, %v22, 0.0
  %24 = vadd.xlane.f32.xlu0 %v23
  %v25 = vpop.xlane.xlu0 %24
  %v26 = vmul.f32 %v25, %v19
  %v27 = vadd.f32 %v26, 1e-05
  %v28 = vrsqrt.pop %v27
  %v29 = vmul.f32 %v21, %v28
  %v30 = vld [vmem:[%s1] sm:$0x1]
  %v32 = vlaneseq
  %v33 = vshrl.u32 %v32, 7
  %v34 = vsub.s32 0, %v33
  %v35 = vrot.slane %v30, %v34
  %v37 = vmul.f32 %v29, %v35
  %v38 = vld [vmem:[%s2] sm:$0x1]
  %v40 = vlaneseq
  %v41 = vshrl.u32 %v40, 7
  %v42 = vsub.s32 0, %v41
  %v43 = vrot.slane %v38, %v42
  %v45 = vadd.f32 %v37, %v43
  %46 = vst.msk [vmem:[%s3] sm:$0x3] %vm15, %v45
  // Predicated region
  $region14: #{visual_transformer_forward.34} parent=0 // pred_check
    _
  $region15: #{visual_transformer_forward.34} parent=0 // pred_check_branch
    %48 = sbr.rel (0) target = $region17
  $region16: #{visual_transformer_forward.34} parent=0 // pred_region
    _
  $region17: #{visual_transformer_forward.34} parent=0 // pred_fallthru
    _
  // Predicated region
  $region18: #{visual_transformer_forward.34} parent=0 // pred_check
    _
  $region19: #{visual_transformer_forward.34} parent=0 // pred_check_branch
    %50 = sbr.rel (0) target = $region21
  $region20: #{visual_transformer_forward.34} parent=0 // pred_region
    _
  $region21: #{visual_transformer_forward.34} parent=0 // pred_fallthru
    _

// kernel: visual_transformer_forward.35
$region0: #{visual_transformer_forward.35}
  #allocation0 [shape = 'u32[]', space=smem, size = 0x4, offset = 0x4, fixed_abs, tag = 'smem constant byte address 0x4 - core index']
  #allocation1 [shape = 'u32[144,128]{1,0:T(1,128)}', space=vmem, size = 0x12000, scoped, tag = 'internal scratch']
  %s0 = inlined_call_operand.vmem [shape: f32[2,32], index: 0, kind: input, shape index: {}]
  %s1 = inlined_call_operand.vmem [shape: f32[32,32], index: 1, kind: input, shape index: {}]
  %s2 = inlined_call_operand.vmem [shape: f32[1,32], index: 2, kind: input, shape index: {}]
  %s3 = inlined_call_operand.hbm [shape: f32[2,32], index: 3, kind: output, shape index: {}]
  %s4 = sld [smem:[#allocation0]]
  $region22: #{visual_transformer_forward.35} parent=0
    _
  %s6 = ssub.s32 1, %s4
  %s7 = scalar_select 0, %s6, %s4
  $region1: #{visual_transformer_forward.35} parent=0
    #allocation2 [shape = 'u8[1024]{0}', space=vmem, size = 0x400, scoped, tag = 'output window, operand 0, single buffered']
    #allocation3 [shape = 's32[1]{0}', space=sflag, size = 0x4, scoped, tag = 'scoped memory for visual_transformer_forward.35']
    %8 = vsyncpa [#allocation3], 0
    // Predicated region
    $region2: #{visual_transformer_forward.35} parent=1 // pred_check
      _
    $region3: #{visual_transformer_forward.35} parent=1 // pred_check_branch
      %10 = sbr.rel (0) target = $region5
    $region4: #{visual_transformer_forward.35} parent=1 // pred_region
      _
    $region5: #{visual_transformer_forward.35} parent=1 // pred_fallthru
      _
    // Predicated region
    $region6: #{visual_transformer_forward.35} parent=1 // pred_check
      _
    $region7: #{visual_transformer_forward.35} parent=1 // pred_check_branch
      %12 = sbr.rel (0) target = $region9
    $region8: #{visual_transformer_forward.35} parent=1 // pred_region
      _
    $region9: #{visual_transformer_forward.35} parent=1 // pred_fallthru
      _
    // Predicated region
    $region10: #{visual_transformer_forward.35} parent=1 // pred_check
      _
    $region11: #{visual_transformer_forward.35} parent=1 // pred_check_branch
      %14 = sbr.rel (0) target = $region13
    $region12: #{visual_transformer_forward.35} parent=1 // pred_region
      _
    $region13: #{visual_transformer_forward.35} parent=1 // pred_fallthru
      _
    %v15 = vld [vmem:[%s0] sm:$0x3]
    %v16 = vld [vmem:[%s1] sm:$0xff]
    %v17 = vld [vmem:[%s1 + $0x8] sm:$0xff]
    %v18 = vld [vmem:[%s1 + $0x10] sm:$0xff]
    %v19 = vld [vmem:[%s1 + $0x18] sm:$0xff]
    %v20 = vld [vmem:[%s2] sm:$0x1]
    %v22 = vlaneseq
    %v23 = vshrl.u32 %v22, 7
    %v24 = vsub.s32 0, %v23
    %v25 = vrot.slane %v20, %v24
    %vm27 = vcmask 261120
    %v29 = vsel %vm27, %v15, 0
    %31 = vmatprep.subr.mxu0 0.0
    %32 = vmatpush1.msra.mxu0 %v16
    %33 = vmatprep.subr.mxu0 0.0
    %34 = vmatpush1.msra.mxu0 %v17
    %35 = vmatprep.subr.mxu0 0.0
    %36 = vmatpush1.msra.mxu0 %v18
    %37 = vmatprep.subr.mxu0 0.0
    %38 = vmatpush1.msra.mxu0 %v19
    %39 = vmatprep.subr.mxu0 0.0
    %40 = vmatpush1.msra.mxu0 0.0
    %41 = vmatprep.subr.mxu0 0.0
    %42 = vmatpush1.msra.mxu0 0.0
    %43 = vmatprep.subr.mxu0 0.0
    %44 = vmatpush1.msra.mxu0 0.0
    %45 = vmatprep.subr.mxu0 0.0
    %46 = vmatpush1.msra.mxu0 0.0
    %47 = vmatprep.subr.mxu0 0.0
    %48 = vmatpush1.msra.mxu0 0.0
    %49 = vmatprep.subr.mxu0 0.0
    %50 = vmatpush1.msra.mxu0 0.0
    %51 = vmatprep.subr.mxu0 0.0
    %52 = vmatpush1.msra.mxu0 0.0
    %53 = vmatprep.subr.mxu0 0.0
    %54 = vmatpush1.msra.mxu0 0.0
    %55 = vmatprep.subr.mxu0 0.0
    %56 = vmatpush1.msra.mxu0 0.0
    %57 = vmatprep.subr.mxu0 0.0
    %58 = vmatpush1.msra.mxu0 0.0
    %59 = vmatprep.subr.mxu0 0.0
    %60 = vmatpush1.msra.mxu0 0.0
    %61 = vmatprep.subr.mxu0 0.0
    %62 = vmatpush1.msra.mxu0 0.0
    %63 = vmatprep.subr.mxu0 0.0
    %64 = vmatpush1.msra.mxu0 0.0
    %65 = vmatprep.subr.mxu0 0.0
    %66 = vmatpush1.msra.mxu0 0.0
    %67 = vmatprep.subr.mxu0 0.0
    %68 = vmatpush1.msra.mxu0 0.0
    %69 = vmatprep.subr.mxu0 0.0
    %70 = vmatpush1.msra.mxu0 0.0
    %71 = vmatprep.subr.mxu0 0.0
    %72 = vmatpush1.msra.mxu0 0.0
    %73 = vmatprep.subr.mxu0 0.0
    %74 = vmatpush1.msra.mxu0 0.0
    %75 = vmatprep.subr.mxu0 0.0
    %76 = vmatpush1.msra.mxu0 0.0
    %77 = vmatprep.subr.mxu0 0.0
    %78 = vmatpush1.msra.mxu0 0.0
    %79 = vmatprep.subr.mxu0 0.0
    %80 = vmatpush1.msra.mxu0 0.0
    %81 = vmatprep.subr.mxu0 0.0
    %82 = vmatpush1.msra.mxu0 0.0
    %83 = vmatprep.subr.mxu0 0.0
    %84 = vmatpush1.msra.mxu0 0.0
    %85 = vmatprep.subr.mxu0 0.0
    %86 = vmatpush1.msra.mxu0 0.0
    %87 = vmatprep.subr.mxu0 0.0
    %88 = vmatpush1.msra.mxu0 0.0
    %89 = vmatprep.subr.mxu0 0.0
    %90 = vmatpush1.msra.mxu0 0.0
    %91 = vmatprep.subr.mxu0 0.0
    %92 = vmatpush1.msra.mxu0 0.0
    %93 = vmatprep.subr.mxu0 0.0
    %94 = vmatpush1.msra.mxu0 0.0
    %95 = vmatprep.mubr.f32.mxu0 0.0
    %96 = vmatmul.mubr.f32.gmra.mrb[0].mxu0 %v29
    %v97 = vpop.f32.mrb[0].mxu0
    %v98 = vadd.f32 %v25, %v97
    %v99 = vpop.f32.mrb[0].mxu0
    %100 = vdwg.mxu0
    %vm101 = vcmask 254976
    %102 = vst.msk [vmem:[#allocation2] sm:$0x3] %vm101, %v98
    // Predicated region
    $region14: #{visual_transformer_forward.35} parent=1 // pred_check
      _
    $region15: #{visual_transformer_forward.35} parent=1 // pred_check_branch
      %104 = sbr.rel (0) target = $region17
    $region16: #{visual_transformer_forward.35} parent=1 // pred_region
      %s106 = ssub.s32 32, 32
      %107 = vsyncadd [#allocation3], %s106
      %s109 = sshll.u32 [#allocation2], 4
      %s110 = int_to_ptr.vmem [resolvable:$true] %s109
      %112 = dma.vmem_to_hbm [thread:$0]  %s110, 32, %s3, [#allocation3]
    $region17: #{visual_transformer_forward.35} parent=1 // pred_fallthru
      _
    // Predicated region
    $region18: #{visual_transformer_forward.35} parent=1 // pred_check
      _
    $region19: #{visual_transformer_forward.35} parent=1 // pred_check_branch
      %114 = sbr.rel (0) target = $region21
    $region20: #{visual_transformer_forward.35} parent=1 // pred_region
      %115 = dma.done [#allocation3], 32
    $region21: #{visual_transformer_forward.35} parent=1 // pred_fallthru
      _
    %116 = vsyncpa [#allocation3], 1

</llo_original>
